<compile_context>
chip_gen: v7x
topology: tpu7x:2x2x1
jax: 0.10.0
libtpu: 0.0.40
codegen_flags: <defaults>
</compile_context>

<pallas_src>
import jax
import jax.numpy as jnp
from jax.experimental import pallas as pl
from jax.experimental.pallas import tpu as pltpu


def _round_up(n, m):
    return ((n + m - 1) // m) * m


def dueling_kernel(x_ref,
                   w1_ref, b1_ref, w2_ref, b2_ref,   # feature layer (padded)
                   ws1_ref, bs1_ref,                 # fused value||advantage hidden layer
                   wh_ref, bh_ref,                   # fused dueling head (value bcast + centered adv)
                   out_ref):
    cdt = w1_ref.dtype  # weights are pre-cast; activations are cast back to cdt per layer

    x = x_ref[...].astype(cdt)

    # feature_layer: Linear -> ReLU -> Linear -> ReLU
    h1 = jnp.dot(x, w1_ref[...], preferred_element_type=jnp.float32) + b1_ref[...]
    h1 = jnp.maximum(h1, 0.0)
    feat = jnp.dot(h1.astype(cdt), w2_ref[...], preferred_element_type=jnp.float32) + b2_ref[...]
    feat = jnp.maximum(feat, 0.0)

    # Fused first Linear+ReLU of BOTH streams in one wide MXU pass: sh = [vh | ah]
    sh = jnp.dot(feat.astype(cdt), ws1_ref[...], preferred_element_type=jnp.float32) + bs1_ref[...]
    sh = jnp.maximum(sh, 0.0)

    # Fused dueling head: value broadcast + (advantage - mean) folded into wh/bh.
    out = jnp.dot(sh.astype(cdt), wh_ref[...], preferred_element_type=jnp.float32) + bh_ref[...]
    out_ref[...] = out.astype(out_ref.dtype)


def pack_params(params, compute_dtype=jnp.bfloat16):
    """Zero-pad to (·,128)-friendly shapes, fuse the two stream hidden layers into
    one wide matmul, and fold the whole dueling epilogue into one head matmul.
    Call once, reuse per step."""
    w1, b1 = params["w1"], params["b1"]
    w2, b2 = params["w2"], params["b2"]
    wv1, bv1 = params["wv1"], params["bv1"]
    wv2, bv2 = params["wv2"], params["bv2"]
    wa1, ba1 = params["wa1"], params["ba1"]
    wa2, ba2 = params["wa2"], params["ba2"]

    din, hidden = w1.shape
    half = wv1.shape[1]
    n_actions = wa2.shape[1]

    hp = _round_up(hidden, 128)
    halfp = _round_up(half, 128)
    ap = _round_up(n_actions, 128)

    def pad2(m, rows, cols):
        return jnp.pad(m, ((0, rows - m.shape[0]), (0, cols - m.shape[1])))

    # Fold the dueling epilogue:
    #   out = value*1_A + (adv - mean_A(adv))
    #       = [vh | ah] @ [[ tile(wv2, A) ],
    #                      [ wa2 - rowmean(wa2) ]] + (bv2*1_A + ba2 - mean(ba2))
    # (row-mean subtraction on wa2/ba2 is exactly "@ (I - 1/A)", done without a matmul
    #  to avoid any reduced-precision pack-time dot).
    A = n_actions
    wa2c = wa2 - wa2.mean(axis=1, keepdims=True)
    ba2c = ba2 - ba2.mean(axis=1, keepdims=True)
    w_head = jnp.concatenate(
        [pad2(jnp.tile(wv2, (1, A)), halfp, ap),   # value stream rows
         pad2(wa2c, halfp, ap)],                   # advantage stream rows (pre-centered)
        axis=0)                                    # (2*halfp, ap)
    b_head = pad2(jnp.tile(bv2, (1, A)) + ba2c, 1, ap)

    packed = dict(
        w1=pad2(w1, din, hp).astype(compute_dtype),
        b1=pad2(b1, 1, hp).astype(jnp.float32),
        w2=pad2(w2, hp, hp).astype(compute_dtype),
        b2=pad2(b2, 1, hp).astype(jnp.float32),
        # fused value||advantage first layer: (hp, 2*halfp)
        ws1=jnp.concatenate([pad2(wv1, hp, halfp), pad2(wa1, hp, halfp)],
                            axis=1).astype(compute_dtype),
        bs1=jnp.concatenate([pad2(bv1, 1, halfp), pad2(ba1, 1, halfp)],
                            axis=1).astype(jnp.float32),
        wh=w_head.astype(compute_dtype),
        bh=b_head.astype(jnp.float32),
    )
    meta = dict(n_actions=n_actions)
    return packed, meta


_WEIGHT_ORDER = ("w1", "b1", "w2", "b2", "ws1", "bs1", "wh", "bh")
_MATMUL_WEIGHTS = frozenset({"w1", "w2", "ws1", "wh"})


def _vmem_limit_bytes(requested):
    # Generation-aware cap: leave headroom for compiler-internal scratch
    # (matters on v7x's 64 MiB/TC); allow more on v5e/v6e's 128 MiB.
    try:
        cap = int(pltpu.get_tpu_info().vmem_capacity_bytes)
    except Exception:
        cap = 64 << 20
    ceiling = max(32 << 20, (cap * 3) // 4)
    return int(min(max(requested, 32 << 20), ceiling))


def dueling_forward(x, packed, *, n_actions, tile_b=None,
                    compute_dtype=jnp.bfloat16, out_dtype=jnp.float32):
    B, din = x.shape
    hp = packed["w1"].shape[1]
    twohalf = packed["wh"].shape[0]
    ap = packed["wh"].shape[1]

    # One-time dtype fix-up OUTSIDE the kernel so per-grid-step weight recasts
    # never happen inside the kernel (those would burn VALU slots every step).
    weights = []
    for name in _WEIGHT_ORDER:
        want = compute_dtype if name in _MATMUL_WEIGHTS else jnp.float32
        w = packed[name]
        weights.append(w if w.dtype == jnp.dtype(want) else w.astype(want))

    sub = 8 if jnp.dtype(compute_dtype) == jnp.dtype(jnp.float32) else 16
    if tile_b is None:
        # >=2 grid steps so v7x megacore gets both TCs, big tiles to amortize
        # the ~0.35us per-step overhead, 16-row multiples for bf16 packing.
        tile_b = min(512, max(sub, _round_up(pl.cdiv(B, 2), sub)))
    tile_b = max(8, _round_up(int(tile_b), 8))
    # Ragged last block is fine: OOB rows read garbage / OOB writes dropped; every
    # op is row-wise so real rows are unaffected, and only out[:, :n_actions] is used.
    grid = (pl.cdiv(B, tile_b),)

    # VMEM budget: resident weights + double-buffered x/out tiles + activations.
    w_bytes = sum(int(w.size) * w.dtype.itemsize for w in weights)
    act_bytes = tile_b * (2 * hp + twohalf + ap) * 4
    io_bytes = 2 * tile_b * (din * x.dtype.itemsize + ap * jnp.dtype(out_dtype).itemsize)
    vmem_limit = _vmem_limit_bytes(2 * w_bytes + 2 * (act_bytes + io_bytes))

    flops = 2 * B * (din * hp + hp * hp + hp * twohalf + twohalf * ap)
    cost = pl.CostEstimate(
        flops=int(flops),
        transcendentals=0,
        bytes_accessed=int(x.size * x.dtype.itemsize + w_bytes
                           + B * ap * jnp.dtype(out_dtype).itemsize),
    )

    def build_specs(single_buffer_weights):
        def resident(shape):
            nd = len(shape)
            kwargs = {}
            if single_buffer_weights:
                # Constant index_map -> same block every step; single-buffering
                # halves the weight VMEM footprint (nothing is ever re-DMA'd).
                kwargs["pipeline_mode"] = pl.Buffered(1)
            return pl.BlockSpec(shape, lambda i: (0,) * nd, **kwargs)

        specs = [pl.BlockSpec((tile_b, din), lambda i: (i, 0))]
        specs += [resident(w.shape) for w in weights]
        return specs

    def run(single_buffer_weights):
        return pl.pallas_call(
            dueling_kernel,
            out_shape=jax.ShapeDtypeStruct((B, ap), out_dtype),
            grid=grid,
            in_specs=build_specs(single_buffer_weights),
            out_specs=pl.BlockSpec((tile_b, ap), lambda i: (i, 0)),
            compiler_params=pltpu.CompilerParams(
                dimension_semantics=("parallel",),   # shard batch across TCs on v7x
                vmem_limit_bytes=vmem_limit,
            ),
            cost_estimate=cost,
        )(x, *weights)

    try:
        out = run(True)
    except Exception:
        # pipeline_mode=pl.Buffered(1) unsupported on this jax version:
        # fall back to default double-buffered weight specs.
        out = run(False)

    return out[:, :n_actions]


def _linear_params(key, fan_in, fan_out):
    # Mimic torch.nn.Linear default init: U(-1/sqrt(fan_in), 1/sqrt(fan_in))
    kw, kb = jax.random.split(key)
    bound = 1.0 / jnp.sqrt(float(fan_in))
    w = jax.random.uniform(kw, (fan_in, fan_out), jnp.float32, -bound, bound)
    b = jax.random.uniform(kb, (1, fan_out), jnp.float32, -bound, bound)
    return w, b


def init_params(key, input_size, max_actions, hidden_size):
    half = hidden_size // 2
    keys = jax.random.split(key, 6)
    w1, b1 = _linear_params(keys[0], input_size, hidden_size)
    w2, b2 = _linear_params(keys[1], hidden_size, hidden_size)
    wv1, bv1 = _linear_params(keys[2], hidden_size, half)
    wv2, bv2 = _linear_params(keys[3], half, 1)
    wa1, ba1 = _linear_params(keys[4], hidden_size, half)
    wa2, ba2 = _linear_params(keys[5], half, max_actions)
    return dict(w1=w1, b1=b1, w2=w2, b2=b2,
                wv1=wv1, bv1=bv1, wv2=wv2, bv2=bv2,
                wa1=wa1, ba1=ba1, wa2=wa2, ba2=ba2)


def reference_forward(x, p):
    relu = lambda v: jnp.maximum(v, 0.0)
    feat = relu(relu(x @ p["w1"] + p["b1"]) @ p["w2"] + p["b2"])
    value = relu(feat @ p["wv1"] + p["bv1"]) @ p["wv2"] + p["bv2"]
    adv = relu(feat @ p["wa1"] + p["ba1"]) @ p["wa2"] + p["ba2"]
    return value + (adv - adv.mean(axis=1, keepdims=True))


if __name__ == "__main__":
    # Small, forward-consistent shapes: batch=16, input_size=32, hidden=32, actions=8.
    # tile_b=8 forces a 2-step batch grid so the pipelined path is exercised.
    batch, input_size, hidden_size, max_actions = 16, 32, 32, 8

    key = jax.random.PRNGKey(0)
    kx, kp = jax.random.split(key)
    x = jax.random.normal(kx, (batch, input_size), jnp.float32)
    params = init_params(kp, input_size, max_actions, hidden_size)

    ref = reference_forward(x, params)

    # 1) Default bf16 fast path (MXU-native on v5e/v6e/v7x) — loose tolerance.
    packed_bf16, meta = pack_params(params)  # compute_dtype defaults to bf16
    out_bf16 = dueling_forward(x, packed_bf16, n_actions=meta["n_actions"], tile_b=8)
    out_bf16 = jax.block_until_ready(out_bf16)
    assert out_bf16.shape == (batch, max_actions)
    assert jnp.allclose(out_bf16, ref, atol=3e-2, rtol=3e-2), \
        float(jnp.max(jnp.abs(out_bf16 - ref)))

    # 2) f32 parity mode — tight tolerance against the pure-JAX reference.
    packed_f32, meta32 = pack_params(params, compute_dtype=jnp.float32)
    out_f32 = dueling_forward(x, packed_f32, n_actions=meta32["n_actions"],
                              tile_b=8, compute_dtype=jnp.float32)
    out_f32 = jax.block_until_ready(out_f32)
    assert out_f32.shape == (batch, max_actions)
    assert jnp.allclose(out_f32, ref, atol=1e-4, rtol=1e-4), \
        float(jnp.max(jnp.abs(out_f32 - ref)))

    print("KERNEL_OK")
</pallas_src>

<mosaic_0001>
module attributes {stable_mosaic.version = 11 : i64} {
  func.func @dueling_kernel(%arg0: i32, %arg1: memref<8x32xf32, #tpu.memory_space<vmem>>, %arg2: memref<32x128xbf16, #tpu.memory_space<vmem>>, %arg3: memref<1x128xf32, #tpu.memory_space<vmem>>, %arg4: memref<128x128xbf16, #tpu.memory_space<vmem>>, %arg5: memref<1x128xf32, #tpu.memory_space<vmem>>, %arg6: memref<128x256xbf16, #tpu.memory_space<vmem>>, %arg7: memref<1x256xf32, #tpu.memory_space<vmem>>, %arg8: memref<256x128xbf16, #tpu.memory_space<vmem>>, %arg9: memref<1x128xf32, #tpu.memory_space<vmem>>, %arg10: memref<8x128xf32, #tpu.memory_space<vmem>>) attributes {dimension_semantics = [#tpu.dimension_semantics<parallel>], iteration_bounds = array<i64: 2>, scalar_prefetch = 0 : i64, scratch_operands = 0 : i64, tpu.core_type = #tpu.core_type<tc>, window_params = [{transform_indices = @transform_0, window_bounds = array<i64: 8, 32>}, {pipeline_mode = #tpu.pipeline_mode<synchronous>, transform_indices = @transform_1, window_bounds = array<i64: 32, 128>}, {pipeline_mode = #tpu.pipeline_mode<synchronous>, transform_indices = @transform_2, window_bounds = array<i64: 1, 128>}, {pipeline_mode = #tpu.pipeline_mode<synchronous>, transform_indices = @transform_3, window_bounds = array<i64: 128, 128>}, {pipeline_mode = #tpu.pipeline_mode<synchronous>, transform_indices = @transform_4, window_bounds = array<i64: 1, 128>}, {pipeline_mode = #tpu.pipeline_mode<synchronous>, transform_indices = @transform_5, window_bounds = array<i64: 128, 256>}, {pipeline_mode = #tpu.pipeline_mode<synchronous>, transform_indices = @transform_6, window_bounds = array<i64: 1, 256>}, {pipeline_mode = #tpu.pipeline_mode<synchronous>, transform_indices = @transform_7, window_bounds = array<i64: 256, 128>}, {pipeline_mode = #tpu.pipeline_mode<synchronous>, transform_indices = @transform_8, window_bounds = array<i64: 1, 128>}, {transform_indices = @transform_9, window_bounds = array<i64: 8, 128>}]} {
    %c0 = arith.constant 0 : index
    %c0_0 = arith.constant 0 : index
    %0 = vector.load %arg1[%c0, %c0_0] : memref<8x32xf32, #tpu.memory_space<vmem>>, vector<8x32xf32>
    %1 = arith.truncf %0 : vector<8x32xf32> to vector<8x32xbf16>
    %c0_1 = arith.constant 0 : index
    %c0_2 = arith.constant 0 : index
    %2 = vector.load %arg2[%c0_1, %c0_2] : memref<32x128xbf16, #tpu.memory_space<vmem>>, vector<32x128xbf16>
    %cst = arith.constant dense<0.000000e+00> : vector<8x128xf32>
    %3 = tpu.matmul %1, %2, %cst {dimension_numbers = #tpu.dot_dimension_numbers<[1], [0], [0], [1], [0, 0, 1, 1], [], []>} : vector<8x32xbf16>, vector<32x128xbf16>, vector<8x128xf32> -> vector<8x128xf32>
    %c0_3 = arith.constant 0 : index
    %c0_4 = arith.constant 0 : index
    %4 = vector.load %arg3[%c0_3, %c0_4] : memref<1x128xf32, #tpu.memory_space<vmem>>, vector<1x128xf32>
    %5 = vector.broadcast %4 : vector<1x128xf32> to vector<8x128xf32>
    %6 = arith.addf %3, %5 : vector<8x128xf32>
    %cst_5 = arith.constant 0.000000e+00 : f32
    %7 = vector.broadcast %cst_5 : f32 to vector<8x128xf32>
    %8 = arith.maximumf %6, %7 : vector<8x128xf32>
    %9 = arith.truncf %8 : vector<8x128xf32> to vector<8x128xbf16>
    %c0_6 = arith.constant 0 : index
    %c0_7 = arith.constant 0 : index
    %10 = vector.load %arg4[%c0_6, %c0_7] : memref<128x128xbf16, #tpu.memory_space<vmem>>, vector<128x128xbf16>
    %cst_8 = arith.constant dense<0.000000e+00> : vector<8x128xf32>
    %11 = tpu.matmul %9, %10, %cst_8 {dimension_numbers = #tpu.dot_dimension_numbers<[1], [0], [0], [1], [0, 0, 1, 1], [], []>} : vector<8x128xbf16>, vector<128x128xbf16>, vector<8x128xf32> -> vector<8x128xf32>
    %c0_9 = arith.constant 0 : index
    %c0_10 = arith.constant 0 : index
    %12 = vector.load %arg5[%c0_9, %c0_10] : memref<1x128xf32, #tpu.memory_space<vmem>>, vector<1x128xf32>
    %13 = vector.broadcast %12 : vector<1x128xf32> to vector<8x128xf32>
    %14 = arith.addf %11, %13 : vector<8x128xf32>
    %cst_11 = arith.constant 0.000000e+00 : f32
    %15 = vector.broadcast %cst_11 : f32 to vector<8x128xf32>
    %16 = arith.maximumf %14, %15 : vector<8x128xf32>
    %17 = arith.truncf %16 : vector<8x128xf32> to vector<8x128xbf16>
    %c0_12 = arith.constant 0 : index
    %c0_13 = arith.constant 0 : index
    %18 = vector.load %arg6[%c0_12, %c0_13] : memref<128x256xbf16, #tpu.memory_space<vmem>>, vector<128x256xbf16>
    %cst_14 = arith.constant dense<0.000000e+00> : vector<8x256xf32>
    %19 = tpu.matmul %17, %18, %cst_14 {dimension_numbers = #tpu.dot_dimension_numbers<[1], [0], [0], [1], [0, 0, 1, 1], [], []>} : vector<8x128xbf16>, vector<128x256xbf16>, vector<8x256xf32> -> vector<8x256xf32>
    %c0_15 = arith.constant 0 : index
    %c0_16 = arith.constant 0 : index
    %20 = vector.load %arg7[%c0_15, %c0_16] : memref<1x256xf32, #tpu.memory_space<vmem>>, vector<1x256xf32>
    %21 = vector.broadcast %20 : vector<1x256xf32> to vector<8x256xf32>
    %22 = arith.addf %19, %21 : vector<8x256xf32>
    %cst_17 = arith.constant 0.000000e+00 : f32
    %23 = vector.broadcast %cst_17 : f32 to vector<8x256xf32>
    %24 = arith.maximumf %22, %23 : vector<8x256xf32>
    %25 = arith.truncf %24 : vector<8x256xf32> to vector<8x256xbf16>
    %c0_18 = arith.constant 0 : index
    %c0_19 = arith.constant 0 : index
    %26 = vector.load %arg8[%c0_18, %c0_19] : memref<256x128xbf16, #tpu.memory_space<vmem>>, vector<256x128xbf16>
    %cst_20 = arith.constant dense<0.000000e+00> : vector<8x128xf32>
    %27 = tpu.matmul %25, %26, %cst_20 {dimension_numbers = #tpu.dot_dimension_numbers<[1], [0], [0], [1], [0, 0, 1, 1], [], []>} : vector<8x256xbf16>, vector<256x128xbf16>, vector<8x128xf32> -> vector<8x128xf32>
    %c0_21 = arith.constant 0 : index
    %c0_22 = arith.constant 0 : index
    %28 = vector.load %arg9[%c0_21, %c0_22] : memref<1x128xf32, #tpu.memory_space<vmem>>, vector<1x128xf32>
    %29 = vector.broadcast %28 : vector<1x128xf32> to vector<8x128xf32>
    %30 = arith.addf %27, %29 : vector<8x128xf32>
    %c0_23 = arith.constant 0 : index
    %c0_24 = arith.constant 0 : index
    %31 = vector.load %arg10[%c0_23, %c0_24] : memref<8x128xf32, #tpu.memory_space<vmem>>, vector<8x128xf32>
    tpu.vector_store %arg10[%c0_23, %c0_24], %30 {strides = array<i32>} : memref<8x128xf32, #tpu.memory_space<vmem>>, vector<8x128xf32>,
    return
  }
  func.func @transform_0(%arg0: i32) -> (i32, i32) {
    %c0_i32 = arith.constant 0 : i32
    %c0_i32_0 = arith.constant 0 : i32
    return %arg0, %c0_i32 : i32, i32
  }
  func.func @transform_1(%arg0: i32) -> (i32, i32) {
    %c0_i32 = arith.constant 0 : i32
    %c0_i32_0 = arith.constant 0 : i32
    %c0_i32_1 = arith.constant 0 : i32
    return %c0_i32, %c0_i32_0 : i32, i32
  }
  func.func @transform_2(%arg0: i32) -> (i32, i32) {
    %c0_i32 = arith.constant 0 : i32
    %c0_i32_0 = arith.constant 0 : i32
    %c0_i32_1 = arith.constant 0 : i32
    return %c0_i32, %c0_i32_0 : i32, i32
  }
  func.func @transform_3(%arg0: i32) -> (i32, i32) {
    %c0_i32 = arith.constant 0 : i32
    %c0_i32_0 = arith.constant 0 : i32
    %c0_i32_1 = arith.constant 0 : i32
    return %c0_i32, %c0_i32_0 : i32, i32
  }
  func.func @transform_4(%arg0: i32) -> (i32, i32) {
    %c0_i32 = arith.constant 0 : i32
    %c0_i32_0 = arith.constant 0 : i32
    %c0_i32_1 = arith.constant 0 : i32
    return %c0_i32, %c0_i32_0 : i32, i32
  }
  func.func @transform_5(%arg0: i32) -> (i32, i32) {
    %c0_i32 = arith.constant 0 : i32
    %c0_i32_0 = arith.constant 0 : i32
    %c0_i32_1 = arith.constant 0 : i32
    return %c0_i32, %c0_i32_0 : i32, i32
  }
  func.func @transform_6(%arg0: i32) -> (i32, i32) {
    %c0_i32 = arith.constant 0 : i32
    %c0_i32_0 = arith.constant 0 : i32
    %c0_i32_1 = arith.constant 0 : i32
    return %c0_i32, %c0_i32_0 : i32, i32
  }
  func.func @transform_7(%arg0: i32) -> (i32, i32) {
    %c0_i32 = arith.constant 0 : i32
    %c0_i32_0 = arith.constant 0 : i32
    %c0_i32_1 = arith.constant 0 : i32
    return %c0_i32, %c0_i32_0 : i32, i32
  }
  func.func @transform_8(%arg0: i32) -> (i32, i32) {
    %c0_i32 = arith.constant 0 : i32
    %c0_i32_0 = arith.constant 0 : i32
    %c0_i32_1 = arith.constant 0 : i32
    return %c0_i32, %c0_i32_0 : i32, i32
  }
  func.func @transform_9(%arg0: i32) -> (i32, i32) {
    %c0_i32 = arith.constant 0 : i32
    %c0_i32_0 = arith.constant 0 : i32
    return %arg0, %c0_i32 : i32, i32
  }
}

module attributes {stable_mosaic.version = 11 : i64} {
  func.func @dueling_kernel(%arg0: i32, %arg1: memref<8x32xf32, #tpu.memory_space<vmem>>, %arg2: memref<32x128xbf16, #tpu.memory_space<vmem>>, %arg3: memref<1x128xf32, #tpu.memory_space<vmem>>, %arg4: memref<128x128xbf16, #tpu.memory_space<vmem>>, %arg5: memref<1x128xf32, #tpu.memory_space<vmem>>, %arg6: memref<128x256xbf16, #tpu.memory_space<vmem>>, %arg7: memref<1x256xf32, #tpu.memory_space<vmem>>, %arg8: memref<256x128xbf16, #tpu.memory_space<vmem>>, %arg9: memref<1x128xf32, #tpu.memory_space<vmem>>, %arg10: memref<8x128xf32, #tpu.memory_space<vmem>>) attributes {dimension_semantics = [#tpu.dimension_semantics<parallel>], iteration_bounds = array<i64: 2>, scalar_prefetch = 0 : i64, scratch_operands = 0 : i64, tpu.core_type = #tpu.core_type<tc>, window_params = [{transform_indices = @transform_0, window_bounds = array<i64: 8, 32>}, {pipeline_mode = #tpu.pipeline_mode<synchronous>, transform_indices = @transform_1, window_bounds = array<i64: 32, 128>}, {pipeline_mode = #tpu.pipeline_mode<synchronous>, transform_indices = @transform_2, window_bounds = array<i64: 1, 128>}, {pipeline_mode = #tpu.pipeline_mode<synchronous>, transform_indices = @transform_3, window_bounds = array<i64: 128, 128>}, {pipeline_mode = #tpu.pipeline_mode<synchronous>, transform_indices = @transform_4, window_bounds = array<i64: 1, 128>}, {pipeline_mode = #tpu.pipeline_mode<synchronous>, transform_indices = @transform_5, window_bounds = array<i64: 128, 256>}, {pipeline_mode = #tpu.pipeline_mode<synchronous>, transform_indices = @transform_6, window_bounds = array<i64: 1, 256>}, {pipeline_mode = #tpu.pipeline_mode<synchronous>, transform_indices = @transform_7, window_bounds = array<i64: 256, 128>}, {pipeline_mode = #tpu.pipeline_mode<synchronous>, transform_indices = @transform_8, window_bounds = array<i64: 1, 128>}, {transform_indices = @transform_9, window_bounds = array<i64: 8, 128>}]} {
    %c0 = arith.constant 0 : index
    %c0_0 = arith.constant 0 : index
    %0 = vector.load %arg1[%c0, %c0_0] : memref<8x32xf32, #tpu.memory_space<vmem>>, vector<8x32xf32>
    %1 = arith.truncf %0 : vector<8x32xf32> to vector<8x32xbf16>
    %c0_1 = arith.constant 0 : index
    %c0_2 = arith.constant 0 : index
    %2 = vector.load %arg2[%c0_1, %c0_2] : memref<32x128xbf16, #tpu.memory_space<vmem>>, vector<32x128xbf16>
    %cst = arith.constant dense<0.000000e+00> : vector<8x128xf32>
    %3 = tpu.matmul %1, %2, %cst {dimension_numbers = #tpu.dot_dimension_numbers<[1], [0], [0], [1], [0, 0, 1, 1], [], []>} : vector<8x32xbf16>, vector<32x128xbf16>, vector<8x128xf32> -> vector<8x128xf32>
    %c0_3 = arith.constant 0 : index
    %c0_4 = arith.constant 0 : index
    %4 = vector.load %arg3[%c0_3, %c0_4] : memref<1x128xf32, #tpu.memory_space<vmem>>, vector<1x128xf32>
    %5 = vector.broadcast %4 : vector<1x128xf32> to vector<8x128xf32>
    %6 = arith.addf %3, %5 : vector<8x128xf32>
    %cst_5 = arith.constant 0.000000e+00 : f32
    %7 = vector.broadcast %cst_5 : f32 to vector<8x128xf32>
    %8 = arith.maximumf %6, %7 : vector<8x128xf32>
    %9 = arith.truncf %8 : vector<8x128xf32> to vector<8x128xbf16>
    %c0_6 = arith.constant 0 : index
    %c0_7 = arith.constant 0 : index
    %10 = vector.load %arg4[%c0_6, %c0_7] : memref<128x128xbf16, #tpu.memory_space<vmem>>, vector<128x128xbf16>
    %cst_8 = arith.constant dense<0.000000e+00> : vector<8x128xf32>
    %11 = tpu.matmul %9, %10, %cst_8 {dimension_numbers = #tpu.dot_dimension_numbers<[1], [0], [0], [1], [0, 0, 1, 1], [], []>} : vector<8x128xbf16>, vector<128x128xbf16>, vector<8x128xf32> -> vector<8x128xf32>
    %c0_9 = arith.constant 0 : index
    %c0_10 = arith.constant 0 : index
    %12 = vector.load %arg5[%c0_9, %c0_10] : memref<1x128xf32, #tpu.memory_space<vmem>>, vector<1x128xf32>
    %13 = vector.broadcast %12 : vector<1x128xf32> to vector<8x128xf32>
    %14 = arith.addf %11, %13 : vector<8x128xf32>
    %cst_11 = arith.constant 0.000000e+00 : f32
    %15 = vector.broadcast %cst_11 : f32 to vector<8x128xf32>
    %16 = arith.maximumf %14, %15 : vector<8x128xf32>
    %17 = arith.truncf %16 : vector<8x128xf32> to vector<8x128xbf16>
    %c0_12 = arith.constant 0 : index
    %c0_13 = arith.constant 0 : index
    %18 = vector.load %arg6[%c0_12, %c0_13] : memref<128x256xbf16, #tpu.memory_space<vmem>>, vector<128x256xbf16>
    %cst_14 = arith.constant dense<0.000000e+00> : vector<8x256xf32>
    %19 = tpu.matmul %17, %18, %cst_14 {dimension_numbers = #tpu.dot_dimension_numbers<[1], [0], [0], [1], [0, 0, 1, 1], [], []>} : vector<8x128xbf16>, vector<128x256xbf16>, vector<8x256xf32> -> vector<8x256xf32>
    %c0_15 = arith.constant 0 : index
    %c0_16 = arith.constant 0 : index
    %20 = vector.load %arg7[%c0_15, %c0_16] : memref<1x256xf32, #tpu.memory_space<vmem>>, vector<1x256xf32>
    %21 = vector.broadcast %20 : vector<1x256xf32> to vector<8x256xf32>
    %22 = arith.addf %19, %21 : vector<8x256xf32>
    %cst_17 = arith.constant 0.000000e+00 : f32
    %23 = vector.broadcast %cst_17 : f32 to vector<8x256xf32>
    %24 = arith.maximumf %22, %23 : vector<8x256xf32>
    %25 = arith.truncf %24 : vector<8x256xf32> to vector<8x256xbf16>
    %c0_18 = arith.constant 0 : index
    %c0_19 = arith.constant 0 : index
    %26 = vector.load %arg8[%c0_18, %c0_19] : memref<256x128xbf16, #tpu.memory_space<vmem>>, vector<256x128xbf16>
    %cst_20 = arith.constant dense<0.000000e+00> : vector<8x128xf32>
    %27 = tpu.matmul %25, %26, %cst_20 {dimension_numbers = #tpu.dot_dimension_numbers<[1], [0], [0], [1], [0, 0, 1, 1], [], []>} : vector<8x256xbf16>, vector<256x128xbf16>, vector<8x128xf32> -> vector<8x128xf32>
    %c0_21 = arith.constant 0 : index
    %c0_22 = arith.constant 0 : index
    %28 = vector.load %arg9[%c0_21, %c0_22] : memref<1x128xf32, #tpu.memory_space<vmem>>, vector<1x128xf32>
    %29 = vector.broadcast %28 : vector<1x128xf32> to vector<8x128xf32>
    %30 = arith.addf %27, %29 : vector<8x128xf32>
    %c0_23 = arith.constant 0 : index
    %c0_24 = arith.constant 0 : index
    %31 = vector.load %arg10[%c0_23, %c0_24] : memref<8x128xf32, #tpu.memory_space<vmem>>, vector<8x128xf32>
    tpu.vector_store %arg10[%c0_23, %c0_24], %30 {strides = array<i32>} : memref<8x128xf32, #tpu.memory_space<vmem>>, vector<8x128xf32>,
    return
  }
  func.func @transform_0(%arg0: i32) -> (i32, i32) {
    %c0_i32 = arith.constant 0 : i32
    %c0_i32_0 = arith.constant 0 : i32
    return %arg0, %c0_i32 : i32, i32
  }
  func.func @transform_1(%arg0: i32) -> (i32, i32) {
    %c0_i32 = arith.constant 0 : i32
    %c0_i32_0 = arith.constant 0 : i32
    %c0_i32_1 = arith.constant 0 : i32
    return %c0_i32, %c0_i32_0 : i32, i32
  }
  func.func @transform_2(%arg0: i32) -> (i32, i32) {
    %c0_i32 = arith.constant 0 : i32
    %c0_i32_0 = arith.constant 0 : i32
    %c0_i32_1 = arith.constant 0 : i32
    return %c0_i32, %c0_i32_0 : i32, i32
  }
  func.func @transform_3(%arg0: i32) -> (i32, i32) {
    %c0_i32 = arith.constant 0 : i32
    %c0_i32_0 = arith.constant 0 : i32
    %c0_i32_1 = arith.constant 0 : i32
    return %c0_i32, %c0_i32_0 : i32, i32
  }
  func.func @transform_4(%arg0: i32) -> (i32, i32) {
    %c0_i32 = arith.constant 0 : i32
    %c0_i32_0 = arith.constant 0 : i32
    %c0_i32_1 = arith.constant 0 : i32
    return %c0_i32, %c0_i32_0 : i32, i32
  }
  func.func @transform_5(%arg0: i32) -> (i32, i32) {
    %c0_i32 = arith.constant 0 : i32
    %c0_i32_0 = arith.constant 0 : i32
    %c0_i32_1 = arith.constant 0 : i32
    return %c0_i32, %c0_i32_0 : i32, i32
  }
  func.func @transform_6(%arg0: i32) -> (i32, i32) {
    %c0_i32 = arith.constant 0 : i32
    %c0_i32_0 = arith.constant 0 : i32
    %c0_i32_1 = arith.constant 0 : i32
    return %c0_i32, %c0_i32_0 : i32, i32
  }
  func.func @transform_7(%arg0: i32) -> (i32, i32) {
    %c0_i32 = arith.constant 0 : i32
    %c0_i32_0 = arith.constant 0 : i32
    %c0_i32_1 = arith.constant 0 : i32
    return %c0_i32, %c0_i32_0 : i32, i32
  }
  func.func @transform_8(%arg0: i32) -> (i32, i32) {
    %c0_i32 = arith.constant 0 : i32
    %c0_i32_0 = arith.constant 0 : i32
    %c0_i32_1 = arith.constant 0 : i32
    return %c0_i32, %c0_i32_0 : i32, i32
  }
  func.func @transform_9(%arg0: i32) -> (i32, i32) {
    %c0_i32 = arith.constant 0 : i32
    %c0_i32_0 = arith.constant 0 : i32
    return %arg0, %c0_i32 : i32, i32
  }
}

</mosaic_0001>

<llo_original>
// kernel: tpu_custom_call.1
$region0: #{tpu_custom_call.1}
  #allocation0 [shape = 'u32[]', space=smem, size = 0x4, offset = 0x4, fixed_abs, tag = 'smem constant byte address 0x4 - core index']
  #allocation1 [shape = 'u32[144,128]{1,0:T(1,128)}', space=vmem, size = 0x12000, scoped, tag = 'internal scratch']
  %s0 = inlined_call_operand.hbm [shape: f32[16,32], index: 0, kind: input, shape index: {}]
  %s1 = inlined_call_operand.hbm [shape: bf16[32,128], index: 1, kind: input, shape index: {}]
  %s2 = inlined_call_operand.vmem [shape: f32[1,128], index: 2, kind: input, shape index: {}]
  %s3 = inlined_call_operand.hbm [shape: bf16[128,128], index: 3, kind: input, shape index: {}]
  %s4 = inlined_call_operand.vmem [shape: f32[1,128], index: 4, kind: input, shape index: {}]
  %s5 = inlined_call_operand.hbm [shape: bf16[128,256], index: 5, kind: input, shape index: {}]
  %s6 = inlined_call_operand.vmem [shape: f32[1,256], index: 6, kind: input, shape index: {}]
  %s7 = inlined_call_operand.hbm [shape: bf16[256,128], index: 7, kind: input, shape index: {}]
  %s8 = inlined_call_operand.vmem [shape: f32[1,128], index: 8, kind: input, shape index: {}]
  %s9 = inlined_call_operand.hbm [shape: f32[16,128], index: 9, kind: output, shape index: {}]
  %s10 = sld [smem:[#allocation0]]
  $region89: #{tpu_custom_call.1} parent=0
    _
  %s12 = ssub.s32 1, %s10
  %s13 = scalar_select 0, %s12, %s10
  $region1: #{tpu_custom_call.1} parent=0
    #allocation2 [shape = 'u8[8192]{0}', space=vmem, size = 0x2000, scoped, tag = 'input window, operand 0']
    #allocation3 [shape = 's32[2]{0}', space=sflag, size = 0x8, scoped, tag = 'scoped memory for tpu_custom_call.1']
    #allocation4 [shape = 's32[2]{0}', space=sflag, size = 0x8, scoped, tag = 'scoped memory for tpu_custom_call.1']
    #allocation5 [shape = 'u8[8192]{0}', space=vmem, size = 0x2000, scoped, tag = 'input window, operand 1, single buffered']
    #allocation6 [shape = 's32[1]{0}', space=sflag, size = 0x4, scoped, tag = 'scoped memory for tpu_custom_call.1']
    #allocation7 [shape = 'u8[32768]{0}', space=vmem, size = 0x8000, scoped, tag = 'input window, operand 3, single buffered']
    #allocation8 [shape = 'u8[65536]{0}', space=vmem, size = 0x10000, scoped, tag = 'input window, operand 5, single buffered']
    #allocation9 [shape = 's32[1]{0}', space=sflag, size = 0x4, scoped, tag = 'scoped memory for tpu_custom_call.1']
    #allocation10 [shape = 'u8[65536]{0}', space=vmem, size = 0x10000, scoped, tag = 'input window, operand 7, single buffered']
    #allocation11 [shape = 'u8[8192]{0}', space=vmem, size = 0x2000, scoped, tag = 'output window, operand 0']
    %14 = vsyncpa [#allocation3], 0
    %s15 = scalar_lea.sflag [#allocation3], 1
    %16 = vsyncpa %s15, 0
    %17 = vsyncpa [#allocation6], 0
    %18 = vsyncpa [#allocation9], 0
    %19 = vsyncpa [#allocation4], 0
    %s20 = scalar_lea.sflag [#allocation4], 1
    %21 = vsyncpa %s20, 0
    loop: start=0, step=1, limit=4
    $region2: #{tpu_custom_call.1} parent=1 // loop_pre_header
      _
    $region3: #{tpu_custom_call.1} parent=1 // loop_header
      %s23 = sphi 0, %s27
      %p24 = scmp.ge.s32.totalorder %s23, 4
      %s33 = sphi 0, %s35
      %s36 = sphi 0, %s33
      %s37 = sphi 0, %s36
      %s53 = sphi 0, %s37
      %s57 = sphi 0, %s57
      %s59 = sphi 0, %s57
      %s60 = sphi 0, %s59
      %s74 = sphi 0, %s60
      %s78 = sphi 0, %s78
      %s80 = sphi 0, %s78
      %s81 = sphi 0, %s80
      %s95 = sphi 0, %s81
      %s99 = sphi 0, %s99
      %s101 = sphi 0, %s99
      %s102 = sphi 0, %s101
      %s116 = sphi 0, %s102
      %s120 = sphi 0, %s120
      %s122 = sphi 0, %s120
      %s123 = sphi 0, %s122
      %s137 = sphi 0, %s123
      %s141 = sphi 0, %s141
      %s143 = sphi 0, %s141
      %s144 = sphi 0, %s143
      %s158 = sphi 0, %s144
      %s162 = sphi 0, %s162
      %s164 = sphi 0, %s162
      %s165 = sphi 0, %s164
      %s179 = sphi 0, %s165
      %s183 = sphi 0, %s183
      %s185 = sphi 0, %s183
      %s186 = sphi 0, %s185
      %s200 = sphi 0, %s186
      %s204 = sphi 0, %s204
      %s206 = sphi 0, %s204
      %s207 = sphi 0, %s206
      %s221 = sphi 0, %s207
      %s227 = sphi 0, %s229
      %s230 = sphi 0, %s227
      %s231 = sphi 0, %s230
      %s247 = sphi 0, %s231
    $region4: #{tpu_custom_call.1} parent=1 // loop_header_branch
      %26 = sbr.rel (%p24) target = $region8
    $region5: #{tpu_custom_call.1} parent=1 // loop_body
      %s28 = ssub.s32 %s23, 1
      %s29 = ssub.s32 %s23, 2
      %s30 = sadd.s32 %s23, 1
      %s31 = ssub.s32 %s23, %s30
      %p32 = scmp.eq.s32.totalorder %s31, 0
      %s34 = sadd.s32 %s33, 1
      %s35 = scalar_select %p32, %s33, %s34
      %p38 = pneg %p32
      %p39 = scmp.eq.s32.totalorder %s23, 1
      %p40 = por %p38, %p39
      %p41 = scmp.ne.s32.totalorder %s33, %s36
      %p42 = scmp.eq.s32.totalorder %s23, 0
      %p43 = por %p41, %p42
      %p44 = scmp.ne.s32.totalorder %s33, %s36
      %p45 = scmp.eq.s32.totalorder %s28, 1
      %p46 = por %p44, %p45
      %p47 = scmp.ne.s32.totalorder %s36, %s37
      %p48 = scmp.eq.s32.totalorder %s28, 0
      %p49 = por %p47, %p48
      %p50 = scmp.ne.s32.totalorder %s36, %s37
      %p51 = scmp.eq.s32.totalorder %s29, 1
      %p52 = por %p50, %p51
      %p54 = scmp.ne.s32.totalorder %s37, %s53
      %p55 = scmp.eq.s32.totalorder %s29, 0
      %p56 = por %p54, %p55
      %s58 = sadd.s32 %s57, 1
      %p61 = scmp.eq.s32.totalorder %s23, 1
      %p62 = scmp.ne.s32.totalorder %s57, %s59
      %p63 = scmp.eq.s32.totalorder %s23, 0
      %p64 = por %p62, %p63
      %p65 = scmp.ne.s32.totalorder %s57, %s59
      %p66 = scmp.eq.s32.totalorder %s28, 1
      %p67 = por %p65, %p66
      %p68 = scmp.ne.s32.totalorder %s59, %s60
      %p69 = scmp.eq.s32.totalorder %s28, 0
      %p70 = por %p68, %p69
      %p71 = scmp.ne.s32.totalorder %s59, %s60
      %p72 = scmp.eq.s32.totalorder %s29, 1
      %p73 = por %p71, %p72
      %p75 = scmp.ne.s32.totalorder %s60, %s74
      %p76 = scmp.eq.s32.totalorder %s29, 0
      %p77 = por %p75, %p76
      %s79 = sadd.s32 %s78, 1
      %p82 = scmp.eq.s32.totalorder %s23, 1
      %p83 = scmp.ne.s32.totalorder %s78, %s80
      %p84 = scmp.eq.s32.totalorder %s23, 0
      %p85 = por %p83, %p84
      %p86 = scmp.ne.s32.totalorder %s78, %s80
      %p87 = scmp.eq.s32.totalorder %s28, 1
      %p88 = por %p86, %p87
      %p89 = scmp.ne.s32.totalorder %s80, %s81
      %p90 = scmp.eq.s32.totalorder %s28, 0
      %p91 = por %p89, %p90
      %p92 = scmp.ne.s32.totalorder %s80, %s81
      %p93 = scmp.eq.s32.totalorder %s29, 1
      %p94 = por %p92, %p93
      %p96 = scmp.ne.s32.totalorder %s81, %s95
      %p97 = scmp.eq.s32.totalorder %s29, 0
      %p98 = por %p96, %p97
      %s100 = sadd.s32 %s99, 1
      %p103 = scmp.eq.s32.totalorder %s23, 1
      %p104 = scmp.ne.s32.totalorder %s99, %s101
      %p105 = scmp.eq.s32.totalorder %s23, 0
      %p106 = por %p104, %p105
      %p107 = scmp.ne.s32.totalorder %s99, %s101
      %p108 = scmp.eq.s32.totalorder %s28, 1
      %p109 = por %p107, %p108
      %p110 = scmp.ne.s32.totalorder %s101, %s102
      %p111 = scmp.eq.s32.totalorder %s28, 0
      %p112 = por %p110, %p111
      %p113 = scmp.ne.s32.totalorder %s101, %s102
      %p114 = scmp.eq.s32.totalorder %s29, 1
      %p115 = por %p113, %p114
      %p117 = scmp.ne.s32.totalorder %s102, %s116
      %p118 = scmp.eq.s32.totalorder %s29, 0
      %p119 = por %p117, %p118
      %s121 = sadd.s32 %s120, 1
      %p124 = scmp.eq.s32.totalorder %s23, 1
      %p125 = scmp.ne.s32.totalorder %s120, %s122
      %p126 = scmp.eq.s32.totalorder %s23, 0
      %p127 = por %p125, %p126
      %p128 = scmp.ne.s32.totalorder %s120, %s122
      %p129 = scmp.eq.s32.totalorder %s28, 1
      %p130 = por %p128, %p129
      %p131 = scmp.ne.s32.totalorder %s122, %s123
      %p132 = scmp.eq.s32.totalorder %s28, 0
      %p133 = por %p131, %p132
      %p134 = scmp.ne.s32.totalorder %s122, %s123
      %p135 = scmp.eq.s32.totalorder %s29, 1
      %p136 = por %p134, %p135
      %p138 = scmp.ne.s32.totalorder %s123, %s137
      %p139 = scmp.eq.s32.totalorder %s29, 0
      %p140 = por %p138, %p139
      %s142 = sadd.s32 %s141, 1
      %p145 = scmp.eq.s32.totalorder %s23, 1
      %p146 = scmp.ne.s32.totalorder %s141, %s143
      %p147 = scmp.eq.s32.totalorder %s23, 0
      %p148 = por %p146, %p147
      %p149 = scmp.ne.s32.totalorder %s141, %s143
      %p150 = scmp.eq.s32.totalorder %s28, 1
      %p151 = por %p149, %p150
      %p152 = scmp.ne.s32.totalorder %s143, %s144
      %p153 = scmp.eq.s32.totalorder %s28, 0
      %p154 = por %p152, %p153
      %p155 = scmp.ne.s32.totalorder %s143, %s144
      %p156 = scmp.eq.s32.totalorder %s29, 1
      %p157 = por %p155, %p156
      %p159 = scmp.ne.s32.totalorder %s144, %s158
      %p160 = scmp.eq.s32.totalorder %s29, 0
      %p161 = por %p159, %p160
      %s163 = sadd.s32 %s162, 1
      %p166 = scmp.eq.s32.totalorder %s23, 1
      %p167 = scmp.ne.s32.totalorder %s162, %s164
      %p168 = scmp.eq.s32.totalorder %s23, 0
      %p169 = por %p167, %p168
      %p170 = scmp.ne.s32.totalorder %s162, %s164
      %p171 = scmp.eq.s32.totalorder %s28, 1
      %p172 = por %p170, %p171
      %p173 = scmp.ne.s32.totalorder %s164, %s165
      %p174 = scmp.eq.s32.totalorder %s28, 0
      %p175 = por %p173, %p174
      %p176 = scmp.ne.s32.totalorder %s164, %s165
      %p177 = scmp.eq.s32.totalorder %s29, 1
      %p178 = por %p176, %p177
      %p180 = scmp.ne.s32.totalorder %s165, %s179
      %p181 = scmp.eq.s32.totalorder %s29, 0
      %p182 = por %p180, %p181
      %s184 = sadd.s32 %s183, 1
      %p187 = scmp.eq.s32.totalorder %s23, 1
      %p188 = scmp.ne.s32.totalorder %s183, %s185
      %p189 = scmp.eq.s32.totalorder %s23, 0
      %p190 = por %p188, %p189
      %p191 = scmp.ne.s32.totalorder %s183, %s185
      %p192 = scmp.eq.s32.totalorder %s28, 1
      %p193 = por %p191, %p192
      %p194 = scmp.ne.s32.totalorder %s185, %s186
      %p195 = scmp.eq.s32.totalorder %s28, 0
      %p196 = por %p194, %p195
      %p197 = scmp.ne.s32.totalorder %s185, %s186
      %p198 = scmp.eq.s32.totalorder %s29, 1
      %p199 = por %p197, %p198
      %p201 = scmp.ne.s32.totalorder %s186, %s200
      %p202 = scmp.eq.s32.totalorder %s29, 0
      %p203 = por %p201, %p202
      %s205 = sadd.s32 %s204, 1
      %p208 = scmp.eq.s32.totalorder %s23, 1
      %p209 = scmp.ne.s32.totalorder %s204, %s206
      %p210 = scmp.eq.s32.totalorder %s23, 0
      %p211 = por %p209, %p210
      %p212 = scmp.ne.s32.totalorder %s204, %s206
      %p213 = scmp.eq.s32.totalorder %s28, 1
      %p214 = por %p212, %p213
      %p215 = scmp.ne.s32.totalorder %s206, %s207
      %p216 = scmp.eq.s32.totalorder %s28, 0
      %p217 = por %p215, %p216
      %p218 = scmp.ne.s32.totalorder %s206, %s207
      %p219 = scmp.eq.s32.totalorder %s29, 1
      %p220 = por %p218, %p219
      %p222 = scmp.ne.s32.totalorder %s207, %s221
      %p223 = scmp.eq.s32.totalorder %s29, 0
      %p224 = por %p222, %p223
      %s225 = ssub.s32 %s23, %s30
      %p226 = scmp.eq.s32.totalorder %s225, 0
      %s228 = sadd.s32 %s227, 1
      %s229 = scalar_select %p226, %s227, %s228
      %p232 = pneg %p226
      %p233 = scmp.eq.s32.totalorder %s23, 1
      %p234 = por %p232, %p233
      %p235 = scmp.ne.s32.totalorder %s227, %s230
      %p236 = scmp.eq.s32.totalorder %s23, 0
      %p237 = por %p235, %p236
      %p238 = scmp.ne.s32.totalorder %s227, %s230
      %p239 = scmp.eq.s32.totalorder %s28, 1
      %p240 = por %p238, %p239
      %p241 = scmp.ne.s32.totalorder %s230, %s231
      %p242 = scmp.eq.s32.totalorder %s28, 0
      %p243 = por %p241, %p242
      %p244 = scmp.ne.s32.totalorder %s230, %s231
      %p245 = scmp.eq.s32.totalorder %s29, 1
      %p246 = por %p244, %p245
      %p248 = scmp.ne.s32.totalorder %s231, %s247
      %p249 = scmp.eq.s32.totalorder %s29, 0
      %p250 = por %p248, %p249
      %p251 = scmp.le.s32.totalorder 1, %s23
      %p252 = scmp.lt.s32.totalorder %s23, 3
      %p253 = pnand %p251, %p252
      %p254 = pneg %p253
      // Predicated region
      $region9: #{tpu_custom_call.1} parent=5 // pred_check
        _
      $region10: #{tpu_custom_call.1} parent=5 // pred_check_branch
        %256 = sbr.rel (%p253) target = $region12
      $region11: #{tpu_custom_call.1} parent=5 // pred_region
        %s257 = ssub.s32 %s23, 1
        // Predicated region
        $region13: #{tpu_custom_call.1} parent=11 // pred_check
          %p258 = pneg %p70
        $region14: #{tpu_custom_call.1} parent=11 // pred_check_branch
          %260 = sbr.rel (%p258) target = $region16
        $region15: #{tpu_custom_call.1} parent=11 // pred_region
          %s262 = ssub.s32 256, 256
          %263 = vsyncadd [#allocation6], %s262
          %s264 = sshll.u32 [#allocation5], 4
          %s265 = int_to_ptr.vmem [resolvable:$true] %s264
          %270 = dma.hbm_to_vmem [thread:$0]  %s1, 256, %s265, [#allocation6], 64, 64, 4
        $region16: #{tpu_custom_call.1} parent=11 // pred_fallthru
          _
        // Predicated region
        $region17: #{tpu_custom_call.1} parent=11 // pred_check
          %p271 = pneg %p91
        $region18: #{tpu_custom_call.1} parent=11 // pred_check_branch
          %273 = sbr.rel (%p271) target = $region20
        $region19: #{tpu_custom_call.1} parent=11 // pred_region
          _
        $region20: #{tpu_custom_call.1} parent=11 // pred_fallthru
          _
        // Predicated region
        $region21: #{tpu_custom_call.1} parent=11 // pred_check
          %p274 = pneg %p112
        $region22: #{tpu_custom_call.1} parent=11 // pred_check_branch
          %276 = sbr.rel (%p274) target = $region24
        $region23: #{tpu_custom_call.1} parent=11 // pred_region
          %s278 = ssub.s32 1024, 1024
          %279 = vsyncadd [#allocation6], %s278
          %s280 = sshll.u32 [#allocation7], 4
          %s281 = int_to_ptr.vmem [resolvable:$true] %s280
          %286 = dma.hbm_to_vmem [thread:$0]  %s3, 1024, %s281, [#allocation6], 64, 64, 4
        $region24: #{tpu_custom_call.1} parent=11 // pred_fallthru
          _
        // Predicated region
        $region25: #{tpu_custom_call.1} parent=11 // pred_check
          %p287 = pneg %p133
        $region26: #{tpu_custom_call.1} parent=11 // pred_check_branch
          %289 = sbr.rel (%p287) target = $region28
        $region27: #{tpu_custom_call.1} parent=11 // pred_region
          _
        $region28: #{tpu_custom_call.1} parent=11 // pred_fallthru
          _
        // Predicated region
        $region29: #{tpu_custom_call.1} parent=11 // pred_check
          %p290 = pneg %p154
        $region30: #{tpu_custom_call.1} parent=11 // pred_check_branch
          %292 = sbr.rel (%p290) target = $region32
        $region31: #{tpu_custom_call.1} parent=11 // pred_region
          %s294 = ssub.s32 2048, 2048
          %295 = vsyncadd [#allocation9], %s294
          %s296 = sshll.u32 [#allocation8], 4
          %s297 = int_to_ptr.vmem [resolvable:$true] %s296
          %302 = dma.hbm_to_vmem [thread:$0]  %s5, 2048, %s297, [#allocation9], 128, 128, 8
        $region32: #{tpu_custom_call.1} parent=11 // pred_fallthru
          _
        // Predicated region
        $region33: #{tpu_custom_call.1} parent=11 // pred_check
          %p303 = pneg %p175
        $region34: #{tpu_custom_call.1} parent=11 // pred_check_branch
          %305 = sbr.rel (%p303) target = $region36
        $region35: #{tpu_custom_call.1} parent=11 // pred_region
          _
        $region36: #{tpu_custom_call.1} parent=11 // pred_fallthru
          _
        // Predicated region
        $region37: #{tpu_custom_call.1} parent=11 // pred_check
          %p306 = pneg %p196
        $region38: #{tpu_custom_call.1} parent=11 // pred_check_branch
          %308 = sbr.rel (%p306) target = $region40
        $region39: #{tpu_custom_call.1} parent=11 // pred_region
          %s310 = ssub.s32 2048, 2048
          %311 = vsyncadd [#allocation9], %s310
          %s312 = sshll.u32 [#allocation10], 4
          %s313 = int_to_ptr.vmem [resolvable:$true] %s312
          %318 = dma.hbm_to_vmem [thread:$0]  %s7, 2048, %s313, [#allocation9], 64, 64, 4
        $region40: #{tpu_custom_call.1} parent=11 // pred_fallthru
          _
        // Predicated region
        $region41: #{tpu_custom_call.1} parent=11 // pred_check
          %p319 = pneg %p217
        $region42: #{tpu_custom_call.1} parent=11 // pred_check_branch
          %321 = sbr.rel (%p319) target = $region44
        $region43: #{tpu_custom_call.1} parent=11 // pred_region
          _
        $region44: #{tpu_custom_call.1} parent=11 // pred_fallthru
          _
      $region12: #{tpu_custom_call.1} parent=5 // pred_fallthru
        _
      %p322 = scmp.lt.s32.totalorder %s23, 2
      // Predicated region
      $region45: #{tpu_custom_call.1} parent=5 // pred_check
        %p323 = pneg %p322
      $region46: #{tpu_custom_call.1} parent=5 // pred_check_branch
        %325 = sbr.rel (%p323) target = $region48
      $region47: #{tpu_custom_call.1} parent=5 // pred_region
        // Predicated region
        $region49: #{tpu_custom_call.1} parent=47 // pred_check
          %p326 = pneg %p43
        $region50: #{tpu_custom_call.1} parent=47 // pred_check_branch
          %328 = sbr.rel (%p326) target = $region52
        $region51: #{tpu_custom_call.1} parent=47 // pred_region
          %s329 = sand.u32 %s33, 1
          %s330 = scalar_lea.sflag [#allocation3], %s329
          %s331 = sand.u32 %s33, 1
          %s332 = smul.addr %s331, 8
          %s333 = scalar_lea.vmem [#allocation2], %s332
          %s335 = ssub.s32 128, 128
          %336 = vsyncadd %s330, %s335
          %s337 = smul.addr %s23, 128
          %s338 = scalar_lea.hbm %s0, %s337
          %s340 = sshll.u32 %s333, 4
          %s341 = int_to_ptr.vmem [resolvable:$true] %s340
          %343 = dma.hbm_to_vmem [thread:$0]  %s338, 128, %s341, %s330
        $region52: #{tpu_custom_call.1} parent=47 // pred_fallthru
          _
      $region48: #{tpu_custom_call.1} parent=5 // pred_fallthru
        _
      %p344 = scmp.le.s32.totalorder 1, %s23
      %p345 = scmp.lt.s32.totalorder %s23, 3
      %p346 = pnand %p344, %p345
      %p347 = pneg %p346
      // Predicated region
      $region53: #{tpu_custom_call.1} parent=5 // pred_check
        _
      $region54: #{tpu_custom_call.1} parent=5 // pred_check_branch
        %349 = sbr.rel (%p346) target = $region56
      $region55: #{tpu_custom_call.1} parent=5 // pred_region
        %s350 = ssub.s32 %s23, 1
        %s351 = sand.u32 %s36, 1
        %s352 = scalar_lea.sflag [#allocation3], %s351
        %s353 = sand.u32 %s36, 1
        %s354 = smul.addr %s353, 8
        %s355 = scalar_lea.vmem [#allocation2], %s354
        // Predicated region
        $region57: #{tpu_custom_call.1} parent=55 // pred_check
          %p356 = pneg %p49
        $region58: #{tpu_custom_call.1} parent=55 // pred_check_branch
          %358 = sbr.rel (%p356) target = $region60
        $region59: #{tpu_custom_call.1} parent=55 // pred_region
          %359 = dma.done %s352, 128
        $region60: #{tpu_custom_call.1} parent=55 // pred_fallthru
          _
        // Predicated region
        $region61: #{tpu_custom_call.1} parent=55 // pred_check
          %p360 = pneg %p70
        $region62: #{tpu_custom_call.1} parent=55 // pred_check_branch
          %362 = sbr.rel (%p360) target = $region64
        $region63: #{tpu_custom_call.1} parent=55 // pred_region
          %363 = dma.done [#allocation6], 256
        $region64: #{tpu_custom_call.1} parent=55 // pred_fallthru
          _
        // Predicated region
        $region65: #{tpu_custom_call.1} parent=55 // pred_check
          %p364 = pneg %p112
        $region66: #{tpu_custom_call.1} parent=55 // pred_check_branch
          %366 = sbr.rel (%p364) target = $region68
        $region67: #{tpu_custom_call.1} parent=55 // pred_region
          %367 = dma.done [#allocation6], 1024
        $region68: #{tpu_custom_call.1} parent=55 // pred_fallthru
          _
        // Predicated region
        $region69: #{tpu_custom_call.1} parent=55 // pred_check
          %p368 = pneg %p154
        $region70: #{tpu_custom_call.1} parent=55 // pred_check_branch
          %370 = sbr.rel (%p368) target = $region72
        $region71: #{tpu_custom_call.1} parent=55 // pred_region
          %371 = dma.done [#allocation9], 2048
        $region72: #{tpu_custom_call.1} parent=55 // pred_fallthru
          _
        // Predicated region
        $region73: #{tpu_custom_call.1} parent=55 // pred_check
          %p372 = pneg %p196
        $region74: #{tpu_custom_call.1} parent=55 // pred_check_branch
          %374 = sbr.rel (%p372) target = $region76
        $region75: #{tpu_custom_call.1} parent=55 // pred_region
          %375 = dma.done [#allocation9], 2048
        $region76: #{tpu_custom_call.1} parent=55 // pred_fallthru
          _
        %s376 = sand.u32 %s36, 1
        %s377 = scalar_lea.sflag [#allocation3], %s376
        %s378 = sand.u32 %s36, 1
        %s379 = smul.addr %s378, 8
        %s380 = scalar_lea.vmem [#allocation2], %s379
        %p381 = pneg %p49
        %p382 = pneg %p46
        %p383 = pneg %p70
        %p384 = pneg %p67
        %p385 = pneg %p91
        %p386 = pneg %p88
        %p387 = pneg %p112
        %p388 = pneg %p109
        %p389 = pneg %p133
        %p390 = pneg %p130
        %p391 = pneg %p154
        %p392 = pneg %p151
        %p393 = pneg %p175
        %p394 = pneg %p172
        %p395 = pneg %p196
        %p396 = pneg %p193
        %p397 = pneg %p217
        %p398 = pneg %p214
        %p399 = pneg %p243
        %p400 = pneg %p240
        %s401 = sand.u32 %s230, 1
        %s402 = scalar_lea.sflag [#allocation4], %s401
        %s403 = sand.u32 %s230, 1
        %s404 = smul.addr %s403, 8
        %s405 = scalar_lea.vmem [#allocation11], %s404
        %v407 = vld [vmem:[%s355] sm:$0xff]
        %v408 = vpack.c.bf16 %v407, %v407
        %v409 = vld [vmem:[#allocation5] sm:$0xf]
        %v410 = vld [vmem:[#allocation5 + $0x4] sm:$0xf]
        %v411 = vld [vmem:[#allocation5 + $0x8] sm:$0xf]
        %v412 = vld [vmem:[#allocation5 + $0xc] sm:$0xf]
        %v413 = vld [vmem:[%s2] sm:$0x1]
        %v415 = vlaneseq
        %v416 = vshrl.u32 %v415, 7
        %v417 = vsub.s32 0, %v416
        %v418 = vrot.slane %v413, %v417
        %v424 = vunpack.c.l.b16 %v409
        %v425 = vunpack.c.l.b16 %v410
        %v426 = vunpack.c.l.b16 %v411
        %v427 = vunpack.c.l.b16 %v412
        %v428 = vpack.c.b16 %v425, %v424
        %v429 = vpack.c.b16 %v427, %v426
        %vm432 = vcmask 261120
        %v434 = vsel %vm432, %v408, 0
        %436 = vmatprep.subr.bf16.mxu0 0
        %437 = vmatpush1.bf16.msra.mxu0 %v428
        %438 = vmatprep.subr.bf16.mxu0 0
        %439 = vmatpush1.bf16.msra.mxu0 %v429
        %440 = vmatprep.subr.bf16.mxu0 0
        %441 = vmatpush1.bf16.msra.mxu0 0
        %442 = vmatprep.subr.bf16.mxu0 0
        %443 = vmatpush1.bf16.msra.mxu0 0
        %444 = vmatprep.subr.bf16.mxu0 0
        %445 = vmatpush1.bf16.msra.mxu0 0
        %446 = vmatprep.subr.bf16.mxu0 0
        %447 = vmatpush1.bf16.msra.mxu0 0
        %448 = vmatprep.subr.bf16.mxu0 0
        %449 = vmatpush1.bf16.msra.mxu0 0
        %450 = vmatprep.subr.bf16.mxu0 0
        %451 = vmatpush1.bf16.msra.mxu0 0
        %452 = vmatprep.subr.bf16.mxu0 0
        %453 = vmatpush1.bf16.msra.mxu0 0
        %454 = vmatprep.subr.bf16.mxu0 0
        %455 = vmatpush1.bf16.msra.mxu0 0
        %456 = vmatprep.subr.bf16.mxu0 0
        %457 = vmatpush1.bf16.msra.mxu0 0
        %458 = vmatprep.subr.bf16.mxu0 0
        %459 = vmatpush1.bf16.msra.mxu0 0
        %460 = vmatprep.subr.bf16.mxu0 0
        %461 = vmatpush1.bf16.msra.mxu0 0
        %462 = vmatprep.subr.bf16.mxu0 0
        %463 = vmatpush1.bf16.msra.mxu0 0
        %464 = vmatprep.subr.bf16.mxu0 0
        %465 = vmatpush1.bf16.msra.mxu0 0
        %466 = vmatprep.subr.bf16.mxu0 0
        %467 = vmatpush1.bf16.msra.mxu0 0
        %468 = vmatprep.mubr.bf16.mxu0 0
        %469 = vmatmul.mubr.bf16.gmra.mrb[0].mxu0 %v434
        %v470 = vpop.f32.mrb[0].mxu0
        %v471 = vadd.f32 %v418, %v470
        %v472 = vpop.f32.mrb[0].mxu0
        %v473 = vpop.f32.mrb[0].mxu0
        %v474 = vpop.f32.mrb[0].mxu0
        %475 = vdwg.mxu0
        %v476 = vmax.f32 %v471, 0.0
        %v477 = vpack.c.bf16 %v476, %v476
        %v478 = vld [vmem:[#allocation7] sm:$0xf]
        %v479 = vld [vmem:[#allocation7 + $0x4] sm:$0xf]
        %v480 = vld [vmem:[#allocation7 + $0x8] sm:$0xf]
        %v481 = vld [vmem:[#allocation7 + $0xc] sm:$0xf]
        %v482 = vld [vmem:[#allocation7 + $0x10] sm:$0xf]
        %v483 = vld [vmem:[#allocation7 + $0x14] sm:$0xf]
        %v484 = vld [vmem:[#allocation7 + $0x18] sm:$0xf]
        %v485 = vld [vmem:[#allocation7 + $0x1c] sm:$0xf]
        %v486 = vld [vmem:[#allocation7 + $0x20] sm:$0xf]
        %v487 = vld [vmem:[#allocation7 + $0x24] sm:$0xf]
        %v488 = vld [vmem:[#allocation7 + $0x28] sm:$0xf]
        %v489 = vld [vmem:[#allocation7 + $0x2c] sm:$0xf]
        %v490 = vld [vmem:[#allocation7 + $0x30] sm:$0xf]
        %v491 = vld [vmem:[#allocation7 + $0x34] sm:$0xf]
        %v492 = vld [vmem:[#allocation7 + $0x38] sm:$0xf]
        %v493 = vld [vmem:[#allocation7 + $0x3c] sm:$0xf]
        %v494 = vld [vmem:[%s4] sm:$0x1]
        %v496 = vlaneseq
        %v497 = vshrl.u32 %v496, 7
        %v498 = vsub.s32 0, %v497
        %v499 = vrot.slane %v494, %v498
        %v517 = vunpack.c.l.b16 %v478
        %v518 = vunpack.c.l.b16 %v479
        %v519 = vunpack.c.l.b16 %v480
        %v520 = vunpack.c.l.b16 %v481
        %v521 = vunpack.c.l.b16 %v482
        %v522 = vunpack.c.l.b16 %v483
        %v523 = vunpack.c.l.b16 %v484
        %v524 = vunpack.c.l.b16 %v485
        %v525 = vunpack.c.l.b16 %v486
        %v526 = vunpack.c.l.b16 %v487
        %v527 = vunpack.c.l.b16 %v488
        %v528 = vunpack.c.l.b16 %v489
        %v529 = vunpack.c.l.b16 %v490
        %v530 = vunpack.c.l.b16 %v491
        %v531 = vunpack.c.l.b16 %v492
        %v532 = vunpack.c.l.b16 %v493
        %v533 = vpack.c.b16 %v518, %v517
        %v534 = vpack.c.b16 %v520, %v519
        %v535 = vpack.c.b16 %v522, %v521
        %v536 = vpack.c.b16 %v524, %v523
        %v537 = vpack.c.b16 %v526, %v525
        %v538 = vpack.c.b16 %v528, %v527
        %v539 = vpack.c.b16 %v530, %v529
        %v540 = vpack.c.b16 %v532, %v531
        %549 = vmatprep.subr.bf16.mxu0 0
        %550 = vmatpush1.bf16.msra.mxu0 %v533
        %551 = vmatprep.subr.bf16.mxu0 0
        %552 = vmatpush1.bf16.msra.mxu0 %v534
        %553 = vmatprep.subr.bf16.mxu0 0
        %554 = vmatpush1.bf16.msra.mxu0 %v535
        %555 = vmatprep.subr.bf16.mxu0 0
        %556 = vmatpush1.bf16.msra.mxu0 %v536
        %557 = vmatprep.subr.bf16.mxu0 0
        %558 = vmatpush1.bf16.msra.mxu0 %v537
        %559 = vmatprep.subr.bf16.mxu0 0
        %560 = vmatpush1.bf16.msra.mxu0 %v538
        %561 = vmatprep.subr.bf16.mxu0 0
        %562 = vmatpush1.bf16.msra.mxu0 %v539
        %563 = vmatprep.subr.bf16.mxu0 0
        %564 = vmatpush1.bf16.msra.mxu0 %v540
        %565 = vmatprep.subr.bf16.mxu0 0
        %566 = vmatpush1.bf16.msra.mxu0 0
        %567 = vmatprep.subr.bf16.mxu0 0
        %568 = vmatpush1.bf16.msra.mxu0 0
        %569 = vmatprep.subr.bf16.mxu0 0
        %570 = vmatpush1.bf16.msra.mxu0 0
        %571 = vmatprep.subr.bf16.mxu0 0
        %572 = vmatpush1.bf16.msra.mxu0 0
        %573 = vmatprep.subr.bf16.mxu0 0
        %574 = vmatpush1.bf16.msra.mxu0 0
        %575 = vmatprep.subr.bf16.mxu0 0
        %576 = vmatpush1.bf16.msra.mxu0 0
        %577 = vmatprep.subr.bf16.mxu0 0
        %578 = vmatpush1.bf16.msra.mxu0 0
        %579 = vmatprep.subr.bf16.mxu0 0
        %580 = vmatpush1.bf16.msra.mxu0 0
        %581 = vmatprep.mubr.bf16.mxu0 0
        %582 = vmatmul.mubr.bf16.gmra.mrb[0].mxu0 %v477
        %v583 = vpop.f32.mrb[0].mxu0
        %v584 = vadd.f32 %v499, %v583
        %v585 = vpop.f32.mrb[0].mxu0
        %v586 = vpop.f32.mrb[0].mxu0
        %v587 = vpop.f32.mrb[0].mxu0
        %588 = vdwg.mxu0
        %v589 = vmax.f32 %v584, 0.0
        %v590 = vpack.c.bf16 %v589, %v589
        %v591 = vld [vmem:[#allocation8] sm:$0xff]
        %v592 = vld [vmem:[#allocation8 + $0x8] sm:$0xff]
        %v593 = vld [vmem:[#allocation8 + $0x10] sm:$0xff]
        %v594 = vld [vmem:[#allocation8 + $0x18] sm:$0xff]
        %v595 = vld [vmem:[#allocation8 + $0x20] sm:$0xff]
        %v596 = vld [vmem:[#allocation8 + $0x28] sm:$0xff]
        %v597 = vld [vmem:[#allocation8 + $0x30] sm:$0xff]
        %v598 = vld [vmem:[#allocation8 + $0x38] sm:$0xff]
        %v599 = vld [vmem:[#allocation8 + $0x40] sm:$0xff]
        %v600 = vld [vmem:[#allocation8 + $0x48] sm:$0xff]
        %v601 = vld [vmem:[#allocation8 + $0x50] sm:$0xff]
        %v602 = vld [vmem:[#allocation8 + $0x58] sm:$0xff]
        %v603 = vld [vmem:[#allocation8 + $0x60] sm:$0xff]
        %v604 = vld [vmem:[#allocation8 + $0x68] sm:$0xff]
        %v605 = vld [vmem:[#allocation8 + $0x70] sm:$0xff]
        %v606 = vld [vmem:[#allocation8 + $0x78] sm:$0xff]
        %v607 = vld [vmem:[%s6] sm:$0x3]
        %v609 = vlaneseq
        %v610 = vshrl.u32 %v609, 7
        %v611 = vsub.s32 0, %v610
        %v612 = vrot.slane %v607, %v611
        %v613 = vlaneseq
        %v614 = vshrl.u32 %v613, 7
        %v615 = vsub.s32 1, %v614
        %v616 = vrot.slane %v607, %v615
        %v635 = vunpack.c.l.b16 %v591
        %v636 = vunpack.c.h.b16 %v591
        %v637 = vunpack.c.l.b16 %v592
        %v638 = vunpack.c.h.b16 %v592
        %v639 = vunpack.c.l.b16 %v593
        %v640 = vunpack.c.h.b16 %v593
        %v641 = vunpack.c.l.b16 %v594
        %v642 = vunpack.c.h.b16 %v594
        %v643 = vunpack.c.l.b16 %v595
        %v644 = vunpack.c.h.b16 %v595
        %v645 = vunpack.c.l.b16 %v596
        %v646 = vunpack.c.h.b16 %v596
        %v647 = vunpack.c.l.b16 %v597
        %v648 = vunpack.c.h.b16 %v597
        %v649 = vunpack.c.l.b16 %v598
        %v650 = vunpack.c.h.b16 %v598
        %v651 = vunpack.c.l.b16 %v599
        %v652 = vunpack.c.h.b16 %v599
        %v653 = vunpack.c.l.b16 %v600
        %v654 = vunpack.c.h.b16 %v600
        %v655 = vunpack.c.l.b16 %v601
        %v656 = vunpack.c.h.b16 %v601
        %v657 = vunpack.c.l.b16 %v602
        %v658 = vunpack.c.h.b16 %v602
        %v659 = vunpack.c.l.b16 %v603
        %v660 = vunpack.c.h.b16 %v603
        %v661 = vunpack.c.l.b16 %v604
        %v662 = vunpack.c.h.b16 %v604
        %v663 = vunpack.c.l.b16 %v605
        %v664 = vunpack.c.h.b16 %v605
        %v665 = vunpack.c.l.b16 %v606
        %v666 = vunpack.c.h.b16 %v606
        %v667 = vpack.c.b16 %v637, %v635
        %v668 = vpack.c.b16 %v638, %v636
        %v669 = vpack.c.b16 %v641, %v639
        %v670 = vpack.c.b16 %v642, %v640
        %v671 = vpack.c.b16 %v645, %v643
        %v672 = vpack.c.b16 %v646, %v644
        %v673 = vpack.c.b16 %v649, %v647
        %v674 = vpack.c.b16 %v650, %v648
        %v675 = vpack.c.b16 %v653, %v651
        %v676 = vpack.c.b16 %v654, %v652
        %v677 = vpack.c.b16 %v657, %v655
        %v678 = vpack.c.b16 %v658, %v656
        %v679 = vpack.c.b16 %v661, %v659
        %v680 = vpack.c.b16 %v662, %v660
        %v681 = vpack.c.b16 %v665, %v663
        %v682 = vpack.c.b16 %v666, %v664
        %699 = vmatprep.subr.bf16.mxu0 %v668
        %700 = vmatpush1.bf16.msra.mxu0 %v667
        %701 = vmatprep.subr.bf16.mxu0 %v670
        %702 = vmatpush1.bf16.msra.mxu0 %v669
        %703 = vmatprep.subr.bf16.mxu0 %v672
        %704 = vmatpush1.bf16.msra.mxu0 %v671
        %705 = vmatprep.subr.bf16.mxu0 %v674
        %706 = vmatpush1.bf16.msra.mxu0 %v673
        %707 = vmatprep.subr.bf16.mxu0 %v676
        %708 = vmatpush1.bf16.msra.mxu0 %v675
        %709 = vmatprep.subr.bf16.mxu0 %v678
        %710 = vmatpush1.bf16.msra.mxu0 %v677
        %711 = vmatprep.subr.bf16.mxu0 %v680
        %712 = vmatpush1.bf16.msra.mxu0 %v679
        %713 = vmatprep.subr.bf16.mxu0 %v682
        %714 = vmatpush1.bf16.msra.mxu0 %v681
        %715 = vmatprep.subr.bf16.mxu0 0
        %716 = vmatpush1.bf16.msra.mxu0 0
        %717 = vmatprep.subr.bf16.mxu0 0
        %718 = vmatpush1.bf16.msra.mxu0 0
        %719 = vmatprep.subr.bf16.mxu0 0
        %720 = vmatpush1.bf16.msra.mxu0 0
        %721 = vmatprep.subr.bf16.mxu0 0
        %722 = vmatpush1.bf16.msra.mxu0 0
        %723 = vmatprep.subr.bf16.mxu0 0
        %724 = vmatpush1.bf16.msra.mxu0 0
        %725 = vmatprep.subr.bf16.mxu0 0
        %726 = vmatpush1.bf16.msra.mxu0 0
        %727 = vmatprep.subr.bf16.mxu0 0
        %728 = vmatpush1.bf16.msra.mxu0 0
        %729 = vmatprep.subr.bf16.mxu0 0
        %730 = vmatpush1.bf16.msra.mxu0 0
        %731 = vmatprep.mubr.bf16.mxu0 0
        %732 = vmatmul.mubr.bf16.gmra.mrb[0].mxu0 %v590
        %v733 = vpop.f32.mrb[0].mxu0
        %v734 = vadd.f32 %v612, %v733
        %v735 = vpop.f32.mrb[0].mxu0
        %v736 = vadd.f32 %v616, %v735
        %v737 = vpop.f32.mrb[0].mxu0
        %v738 = vpop.f32.mrb[0].mxu0
        %739 = vdwg.mxu0
        %v740 = vmax.f32 %v734, 0.0
        %v741 = vmax.f32 %v736, 0.0
        %v742 = vpack.c.bf16 %v740, %v740
        %v743 = vpack.c.bf16 %v741, %v741
        %v744 = vld [vmem:[#allocation10] sm:$0xf]
        %v745 = vld [vmem:[#allocation10 + $0x4] sm:$0xf]
        %v746 = vld [vmem:[#allocation10 + $0x8] sm:$0xf]
        %v747 = vld [vmem:[#allocation10 + $0xc] sm:$0xf]
        %v748 = vld [vmem:[#allocation10 + $0x10] sm:$0xf]
        %v749 = vld [vmem:[#allocation10 + $0x14] sm:$0xf]
        %v750 = vld [vmem:[#allocation10 + $0x18] sm:$0xf]
        %v751 = vld [vmem:[#allocation10 + $0x1c] sm:$0xf]
        %v752 = vld [vmem:[#allocation10 + $0x20] sm:$0xf]
        %v753 = vld [vmem:[#allocation10 + $0x24] sm:$0xf]
        %v754 = vld [vmem:[#allocation10 + $0x28] sm:$0xf]
        %v755 = vld [vmem:[#allocation10 + $0x2c] sm:$0xf]
        %v756 = vld [vmem:[#allocation10 + $0x30] sm:$0xf]
        %v757 = vld [vmem:[#allocation10 + $0x34] sm:$0xf]
        %v758 = vld [vmem:[#allocation10 + $0x38] sm:$0xf]
        %v759 = vld [vmem:[#allocation10 + $0x3c] sm:$0xf]
        %v760 = vld [vmem:[#allocation10 + $0x40] sm:$0xf]
        %v761 = vld [vmem:[#allocation10 + $0x44] sm:$0xf]
        %v762 = vld [vmem:[#allocation10 + $0x48] sm:$0xf]
        %v763 = vld [vmem:[#allocation10 + $0x4c] sm:$0xf]
        %v764 = vld [vmem:[#allocation10 + $0x50] sm:$0xf]
        %v765 = vld [vmem:[#allocation10 + $0x54] sm:$0xf]
        %v766 = vld [vmem:[#allocation10 + $0x58] sm:$0xf]
        %v767 = vld [vmem:[#allocation10 + $0x5c] sm:$0xf]
        %v768 = vld [vmem:[#allocation10 + $0x60] sm:$0xf]
        %v769 = vld [vmem:[#allocation10 + $0x64] sm:$0xf]
        %v770 = vld [vmem:[#allocation10 + $0x68] sm:$0xf]
        %v771 = vld [vmem:[#allocation10 + $0x6c] sm:$0xf]
        %v772 = vld [vmem:[#allocation10 + $0x70] sm:$0xf]
        %v773 = vld [vmem:[#allocation10 + $0x74] sm:$0xf]
        %v774 = vld [vmem:[#allocation10 + $0x78] sm:$0xf]
        %v775 = vld [vmem:[#allocation10 + $0x7c] sm:$0xf]
        %v776 = vld [vmem:[%s8] sm:$0x1]
        %v778 = vlaneseq
        %v779 = vshrl.u32 %v778, 7
        %v780 = vsub.s32 0, %v779
        %v781 = vrot.slane %v776, %v780
        %v815 = vunpack.c.l.b16 %v744
        %v816 = vunpack.c.l.b16 %v745
        %v817 = vunpack.c.l.b16 %v746
        %v818 = vunpack.c.l.b16 %v747
        %v819 = vunpack.c.l.b16 %v748
        %v820 = vunpack.c.l.b16 %v749
        %v821 = vunpack.c.l.b16 %v750
        %v822 = vunpack.c.l.b16 %v751
        %v823 = vunpack.c.l.b16 %v752
        %v824 = vunpack.c.l.b16 %v753
        %v825 = vunpack.c.l.b16 %v754
        %v826 = vunpack.c.l.b16 %v755
        %v827 = vunpack.c.l.b16 %v756
        %v828 = vunpack.c.l.b16 %v757
        %v829 = vunpack.c.l.b16 %v758
        %v830 = vunpack.c.l.b16 %v759
        %v831 = vunpack.c.l.b16 %v760
        %v832 = vunpack.c.l.b16 %v761
        %v833 = vunpack.c.l.b16 %v762
        %v834 = vunpack.c.l.b16 %v763
        %v835 = vunpack.c.l.b16 %v764
        %v836 = vunpack.c.l.b16 %v765
        %v837 = vunpack.c.l.b16 %v766
        %v838 = vunpack.c.l.b16 %v767
        %v839 = vunpack.c.l.b16 %v768
        %v840 = vunpack.c.l.b16 %v769
        %v841 = vunpack.c.l.b16 %v770
        %v842 = vunpack.c.l.b16 %v771
        %v843 = vunpack.c.l.b16 %v772
        %v844 = vunpack.c.l.b16 %v773
        %v845 = vunpack.c.l.b16 %v774
        %v846 = vunpack.c.l.b16 %v775
        %v847 = vpack.c.b16 %v816, %v815
        %v848 = vpack.c.b16 %v818, %v817
        %v849 = vpack.c.b16 %v820, %v819
        %v850 = vpack.c.b16 %v822, %v821
        %v851 = vpack.c.b16 %v824, %v823
        %v852 = vpack.c.b16 %v826, %v825
        %v853 = vpack.c.b16 %v828, %v827
        %v854 = vpack.c.b16 %v830, %v829
        %v855 = vpack.c.b16 %v832, %v831
        %v856 = vpack.c.b16 %v834, %v833
        %v857 = vpack.c.b16 %v836, %v835
        %v858 = vpack.c.b16 %v838, %v837
        %v859 = vpack.c.b16 %v840, %v839
        %v860 = vpack.c.b16 %v842, %v841
        %v861 = vpack.c.b16 %v844, %v843
        %v862 = vpack.c.b16 %v846, %v845
        %879 = vmatprep.subr.bf16.mxu0 0
        %880 = vmatpush1.bf16.msra.mxu0 %v847
        %881 = vmatprep.subr.bf16.mxu0 0
        %882 = vmatpush1.bf16.msra.mxu0 %v848
        %883 = vmatprep.subr.bf16.mxu0 0
        %884 = vmatpush1.bf16.msra.mxu0 %v849
        %885 = vmatprep.subr.bf16.mxu0 0
        %886 = vmatpush1.bf16.msra.mxu0 %v850
        %887 = vmatprep.subr.bf16.mxu0 0
        %888 = vmatpush1.bf16.msra.mxu0 %v851
        %889 = vmatprep.subr.bf16.mxu0 0
        %890 = vmatpush1.bf16.msra.mxu0 %v852
        %891 = vmatprep.subr.bf16.mxu0 0
        %892 = vmatpush1.bf16.msra.mxu0 %v853
        %893 = vmatprep.subr.bf16.mxu0 0
        %894 = vmatpush1.bf16.msra.mxu0 %v854
        %895 = vmatprep.subr.bf16.mxu0 0
        %896 = vmatpush1.bf16.msra.mxu0 %v855
        %897 = vmatprep.subr.bf16.mxu0 0
        %898 = vmatpush1.bf16.msra.mxu0 %v856
        %899 = vmatprep.subr.bf16.mxu0 0
        %900 = vmatpush1.bf16.msra.mxu0 %v857
        %901 = vmatprep.subr.bf16.mxu0 0
        %902 = vmatpush1.bf16.msra.mxu0 %v858
        %903 = vmatprep.subr.bf16.mxu0 0
        %904 = vmatpush1.bf16.msra.mxu0 %v859
        %905 = vmatprep.subr.bf16.mxu0 0
        %906 = vmatpush1.bf16.msra.mxu0 %v860
        %907 = vmatprep.subr.bf16.mxu0 0
        %908 = vmatpush1.bf16.msra.mxu0 %v861
        %909 = vmatprep.subr.bf16.mxu0 0
        %910 = vmatpush1.bf16.msra.mxu0 %v862
        %911 = vmatprep.mubr.bf16.mxu0 %v743
        %912 = vmatmul.mubr.bf16.gmra.mrb[0].mxu0 %v742
        %v913 = vpop.f32.mrb[0].mxu0
        %v914 = vadd.f32 %v781, %v913
        %v915 = vpop.f32.mrb[0].mxu0
        %v916 = vpop.f32.mrb[0].mxu0
        %v917 = vpop.f32.mrb[0].mxu0
        %918 = vdwg.mxu0
        %919 = vst [vmem:[%s405] sm:$0xff] %v914
        %s920 = sand.u32 %s230, 1
        %s921 = scalar_lea.sflag [#allocation4], %s920
        %s922 = sand.u32 %s230, 1
        %s923 = smul.addr %s922, 8
        %s924 = scalar_lea.vmem [#allocation11], %s923
        // Predicated region
        $region77: #{tpu_custom_call.1} parent=55 // pred_check
          %p925 = pneg %p240
        $region78: #{tpu_custom_call.1} parent=55 // pred_check_branch
          %927 = sbr.rel (%p925) target = $region80
        $region79: #{tpu_custom_call.1} parent=55 // pred_region
          %s929 = ssub.s32 128, 128
          %930 = vsyncadd %s921, %s929
          %s931 = smul.addr %s28, 128
          %s932 = scalar_lea.hbm %s9, %s931
          %s934 = sshll.u32 %s924, 4
          %s935 = int_to_ptr.vmem [resolvable:$true] %s934
          %937 = dma.vmem_to_hbm [thread:$0]  %s935, 128, %s932, %s921
        $region80: #{tpu_custom_call.1} parent=55 // pred_fallthru
          _
      $region56: #{tpu_custom_call.1} parent=5 // pred_fallthru
        _
      %p938 = scmp.le.s32.totalorder 2, %s23
      // Predicated region
      $region81: #{tpu_custom_call.1} parent=5 // pred_check
        %p939 = pneg %p938
      $region82: #{tpu_custom_call.1} parent=5 // pred_check_branch
        %941 = sbr.rel (%p939) target = $region84
      $region83: #{tpu_custom_call.1} parent=5 // pred_region
        %s942 = ssub.s32 %s23, 2
        // Predicated region
        $region85: #{tpu_custom_call.1} parent=83 // pred_check
          %p943 = pneg %p246
        $region86: #{tpu_custom_call.1} parent=83 // pred_check_branch
          %945 = sbr.rel (%p943) target = $region88
        $region87: #{tpu_custom_call.1} parent=83 // pred_region
          %s946 = sand.u32 %s231, 1
          %s947 = scalar_lea.sflag [#allocation4], %s946
          %s948 = sand.u32 %s231, 1
          %s949 = smul.addr %s948, 8
          %s950 = scalar_lea.vmem [#allocation11], %s949
          %951 = dma.done %s947, 128
        $region88: #{tpu_custom_call.1} parent=83 // pred_fallthru
          _
      $region84: #{tpu_custom_call.1} parent=5 // pred_fallthru
        _
    $region6: #{tpu_custom_call.1} parent=1 // loop_footer
      %s27 = sadd.s32 1, %s23
    $region7: #{tpu_custom_call.1} parent=1 // loop_footer_branch
      %22 = sbr.rel target = $region3
    $region8: #{tpu_custom_call.1} parent=1 // loop_exit
      _
    %952 = vsyncpa [#allocation3], 1
    %s953 = scalar_lea.sflag [#allocation3], 1
    %954 = vsyncpa %s953, 1
    %955 = vsyncpa [#allocation6], 1
    %956 = vsyncpa [#allocation9], 1
    %957 = vsyncpa [#allocation4], 1
    %s958 = scalar_lea.sflag [#allocation4], 1
    %959 = vsyncpa %s958, 1

// kernel: tpu_custom_call.1
$region0: #{tpu_custom_call.1}
  #allocation0 [shape = 'u32[]', space=smem, size = 0x4, offset = 0x4, fixed_abs, tag = 'smem constant byte address 0x4 - core index']
  #allocation1 [shape = 'u32[144,128]{1,0:T(1,128)}', space=vmem, size = 0x12000, scoped, tag = 'internal scratch']
  %s0 = inlined_call_operand.hbm [shape: f32[16,32], index: 0, kind: input, shape index: {}]
  %s1 = inlined_call_operand.hbm [shape: bf16[32,128], index: 1, kind: input, shape index: {}]
  %s2 = inlined_call_operand.vmem [shape: f32[1,128], index: 2, kind: input, shape index: {}]
  %s3 = inlined_call_operand.hbm [shape: bf16[128,128], index: 3, kind: input, shape index: {}]
  %s4 = inlined_call_operand.vmem [shape: f32[1,128], index: 4, kind: input, shape index: {}]
  %s5 = inlined_call_operand.hbm [shape: bf16[128,256], index: 5, kind: input, shape index: {}]
  %s6 = inlined_call_operand.vmem [shape: f32[1,256], index: 6, kind: input, shape index: {}]
  %s7 = inlined_call_operand.hbm [shape: bf16[256,128], index: 7, kind: input, shape index: {}]
  %s8 = inlined_call_operand.vmem [shape: f32[1,128], index: 8, kind: input, shape index: {}]
  %s9 = inlined_call_operand.hbm [shape: f32[16,128], index: 9, kind: output, shape index: {}]
  %s10 = sld [smem:[#allocation0]]
  $region89: #{tpu_custom_call.1} parent=0
    _
  %s12 = ssub.s32 1, %s10
  %s13 = scalar_select 0, %s12, %s10
  $region1: #{tpu_custom_call.1} parent=0
    #allocation2 [shape = 'u8[8192]{0}', space=vmem, size = 0x2000, scoped, tag = 'input window, operand 0']
    #allocation3 [shape = 's32[2]{0}', space=sflag, size = 0x8, scoped, tag = 'scoped memory for tpu_custom_call.1']
    #allocation4 [shape = 's32[2]{0}', space=sflag, size = 0x8, scoped, tag = 'scoped memory for tpu_custom_call.1']
    #allocation5 [shape = 'u8[8192]{0}', space=vmem, size = 0x2000, scoped, tag = 'input window, operand 1, single buffered']
    #allocation6 [shape = 's32[1]{0}', space=sflag, size = 0x4, scoped, tag = 'scoped memory for tpu_custom_call.1']
    #allocation7 [shape = 'u8[32768]{0}', space=vmem, size = 0x8000, scoped, tag = 'input window, operand 3, single buffered']
    #allocation8 [shape = 'u8[65536]{0}', space=vmem, size = 0x10000, scoped, tag = 'input window, operand 5, single buffered']
    #allocation9 [shape = 's32[1]{0}', space=sflag, size = 0x4, scoped, tag = 'scoped memory for tpu_custom_call.1']
    #allocation10 [shape = 'u8[65536]{0}', space=vmem, size = 0x10000, scoped, tag = 'input window, operand 7, single buffered']
    #allocation11 [shape = 'u8[8192]{0}', space=vmem, size = 0x2000, scoped, tag = 'output window, operand 0']
    %14 = vsyncpa [#allocation3], 0
    %s15 = scalar_lea.sflag [#allocation3], 1
    %16 = vsyncpa %s15, 0
    %17 = vsyncpa [#allocation6], 0
    %18 = vsyncpa [#allocation9], 0
    %19 = vsyncpa [#allocation4], 0
    %s20 = scalar_lea.sflag [#allocation4], 1
    %21 = vsyncpa %s20, 0
    loop: start=0, step=1, limit=4
    $region2: #{tpu_custom_call.1} parent=1 // loop_pre_header
      _
    $region3: #{tpu_custom_call.1} parent=1 // loop_header
      %s23 = sphi 0, %s27
      %p24 = scmp.ge.s32.totalorder %s23, 4
      %s33 = sphi 0, %s35
      %s36 = sphi 0, %s33
      %s37 = sphi 0, %s36
      %s53 = sphi 0, %s37
      %s57 = sphi 0, %s57
      %s59 = sphi 0, %s57
      %s60 = sphi 0, %s59
      %s74 = sphi 0, %s60
      %s78 = sphi 0, %s78
      %s80 = sphi 0, %s78
      %s81 = sphi 0, %s80
      %s95 = sphi 0, %s81
      %s99 = sphi 0, %s99
      %s101 = sphi 0, %s99
      %s102 = sphi 0, %s101
      %s116 = sphi 0, %s102
      %s120 = sphi 0, %s120
      %s122 = sphi 0, %s120
      %s123 = sphi 0, %s122
      %s137 = sphi 0, %s123
      %s141 = sphi 0, %s141
      %s143 = sphi 0, %s141
      %s144 = sphi 0, %s143
      %s158 = sphi 0, %s144
      %s162 = sphi 0, %s162
      %s164 = sphi 0, %s162
      %s165 = sphi 0, %s164
      %s179 = sphi 0, %s165
      %s183 = sphi 0, %s183
      %s185 = sphi 0, %s183
      %s186 = sphi 0, %s185
      %s200 = sphi 0, %s186
      %s204 = sphi 0, %s204
      %s206 = sphi 0, %s204
      %s207 = sphi 0, %s206
      %s221 = sphi 0, %s207
      %s227 = sphi 0, %s229
      %s230 = sphi 0, %s227
      %s231 = sphi 0, %s230
      %s247 = sphi 0, %s231
    $region4: #{tpu_custom_call.1} parent=1 // loop_header_branch
      %26 = sbr.rel (%p24) target = $region8
    $region5: #{tpu_custom_call.1} parent=1 // loop_body
      %s28 = ssub.s32 %s23, 1
      %s29 = ssub.s32 %s23, 2
      %s30 = sadd.s32 %s23, 1
      %s31 = ssub.s32 %s23, %s30
      %p32 = scmp.eq.s32.totalorder %s31, 0
      %s34 = sadd.s32 %s33, 1
      %s35 = scalar_select %p32, %s33, %s34
      %p38 = pneg %p32
      %p39 = scmp.eq.s32.totalorder %s23, 1
      %p40 = por %p38, %p39
      %p41 = scmp.ne.s32.totalorder %s33, %s36
      %p42 = scmp.eq.s32.totalorder %s23, 0
      %p43 = por %p41, %p42
      %p44 = scmp.ne.s32.totalorder %s33, %s36
      %p45 = scmp.eq.s32.totalorder %s28, 1
      %p46 = por %p44, %p45
      %p47 = scmp.ne.s32.totalorder %s36, %s37
      %p48 = scmp.eq.s32.totalorder %s28, 0
      %p49 = por %p47, %p48
      %p50 = scmp.ne.s32.totalorder %s36, %s37
      %p51 = scmp.eq.s32.totalorder %s29, 1
      %p52 = por %p50, %p51
      %p54 = scmp.ne.s32.totalorder %s37, %s53
      %p55 = scmp.eq.s32.totalorder %s29, 0
      %p56 = por %p54, %p55
      %s58 = sadd.s32 %s57, 1
      %p61 = scmp.eq.s32.totalorder %s23, 1
      %p62 = scmp.ne.s32.totalorder %s57, %s59
      %p63 = scmp.eq.s32.totalorder %s23, 0
      %p64 = por %p62, %p63
      %p65 = scmp.ne.s32.totalorder %s57, %s59
      %p66 = scmp.eq.s32.totalorder %s28, 1
      %p67 = por %p65, %p66
      %p68 = scmp.ne.s32.totalorder %s59, %s60
      %p69 = scmp.eq.s32.totalorder %s28, 0
      %p70 = por %p68, %p69
      %p71 = scmp.ne.s32.totalorder %s59, %s60
      %p72 = scmp.eq.s32.totalorder %s29, 1
      %p73 = por %p71, %p72
      %p75 = scmp.ne.s32.totalorder %s60, %s74
      %p76 = scmp.eq.s32.totalorder %s29, 0
      %p77 = por %p75, %p76
      %s79 = sadd.s32 %s78, 1
      %p82 = scmp.eq.s32.totalorder %s23, 1
      %p83 = scmp.ne.s32.totalorder %s78, %s80
      %p84 = scmp.eq.s32.totalorder %s23, 0
      %p85 = por %p83, %p84
      %p86 = scmp.ne.s32.totalorder %s78, %s80
      %p87 = scmp.eq.s32.totalorder %s28, 1
      %p88 = por %p86, %p87
      %p89 = scmp.ne.s32.totalorder %s80, %s81
      %p90 = scmp.eq.s32.totalorder %s28, 0
      %p91 = por %p89, %p90
      %p92 = scmp.ne.s32.totalorder %s80, %s81
      %p93 = scmp.eq.s32.totalorder %s29, 1
      %p94 = por %p92, %p93
      %p96 = scmp.ne.s32.totalorder %s81, %s95
      %p97 = scmp.eq.s32.totalorder %s29, 0
      %p98 = por %p96, %p97
      %s100 = sadd.s32 %s99, 1
      %p103 = scmp.eq.s32.totalorder %s23, 1
      %p104 = scmp.ne.s32.totalorder %s99, %s101
      %p105 = scmp.eq.s32.totalorder %s23, 0
      %p106 = por %p104, %p105
      %p107 = scmp.ne.s32.totalorder %s99, %s101
      %p108 = scmp.eq.s32.totalorder %s28, 1
      %p109 = por %p107, %p108
      %p110 = scmp.ne.s32.totalorder %s101, %s102
      %p111 = scmp.eq.s32.totalorder %s28, 0
      %p112 = por %p110, %p111
      %p113 = scmp.ne.s32.totalorder %s101, %s102
      %p114 = scmp.eq.s32.totalorder %s29, 1
      %p115 = por %p113, %p114
      %p117 = scmp.ne.s32.totalorder %s102, %s116
      %p118 = scmp.eq.s32.totalorder %s29, 0
      %p119 = por %p117, %p118
      %s121 = sadd.s32 %s120, 1
      %p124 = scmp.eq.s32.totalorder %s23, 1
      %p125 = scmp.ne.s32.totalorder %s120, %s122
      %p126 = scmp.eq.s32.totalorder %s23, 0
      %p127 = por %p125, %p126
      %p128 = scmp.ne.s32.totalorder %s120, %s122
      %p129 = scmp.eq.s32.totalorder %s28, 1
      %p130 = por %p128, %p129
      %p131 = scmp.ne.s32.totalorder %s122, %s123
      %p132 = scmp.eq.s32.totalorder %s28, 0
      %p133 = por %p131, %p132
      %p134 = scmp.ne.s32.totalorder %s122, %s123
      %p135 = scmp.eq.s32.totalorder %s29, 1
      %p136 = por %p134, %p135
      %p138 = scmp.ne.s32.totalorder %s123, %s137
      %p139 = scmp.eq.s32.totalorder %s29, 0
      %p140 = por %p138, %p139
      %s142 = sadd.s32 %s141, 1
      %p145 = scmp.eq.s32.totalorder %s23, 1
      %p146 = scmp.ne.s32.totalorder %s141, %s143
      %p147 = scmp.eq.s32.totalorder %s23, 0
      %p148 = por %p146, %p147
      %p149 = scmp.ne.s32.totalorder %s141, %s143
      %p150 = scmp.eq.s32.totalorder %s28, 1
      %p151 = por %p149, %p150
      %p152 = scmp.ne.s32.totalorder %s143, %s144
      %p153 = scmp.eq.s32.totalorder %s28, 0
      %p154 = por %p152, %p153
      %p155 = scmp.ne.s32.totalorder %s143, %s144
      %p156 = scmp.eq.s32.totalorder %s29, 1
      %p157 = por %p155, %p156
      %p159 = scmp.ne.s32.totalorder %s144, %s158
      %p160 = scmp.eq.s32.totalorder %s29, 0
      %p161 = por %p159, %p160
      %s163 = sadd.s32 %s162, 1
      %p166 = scmp.eq.s32.totalorder %s23, 1
      %p167 = scmp.ne.s32.totalorder %s162, %s164
      %p168 = scmp.eq.s32.totalorder %s23, 0
      %p169 = por %p167, %p168
      %p170 = scmp.ne.s32.totalorder %s162, %s164
      %p171 = scmp.eq.s32.totalorder %s28, 1
      %p172 = por %p170, %p171
      %p173 = scmp.ne.s32.totalorder %s164, %s165
      %p174 = scmp.eq.s32.totalorder %s28, 0
      %p175 = por %p173, %p174
      %p176 = scmp.ne.s32.totalorder %s164, %s165
      %p177 = scmp.eq.s32.totalorder %s29, 1
      %p178 = por %p176, %p177
      %p180 = scmp.ne.s32.totalorder %s165, %s179
      %p181 = scmp.eq.s32.totalorder %s29, 0
      %p182 = por %p180, %p181
      %s184 = sadd.s32 %s183, 1
      %p187 = scmp.eq.s32.totalorder %s23, 1
      %p188 = scmp.ne.s32.totalorder %s183, %s185
      %p189 = scmp.eq.s32.totalorder %s23, 0
      %p190 = por %p188, %p189
      %p191 = scmp.ne.s32.totalorder %s183, %s185
      %p192 = scmp.eq.s32.totalorder %s28, 1
      %p193 = por %p191, %p192
      %p194 = scmp.ne.s32.totalorder %s185, %s186
      %p195 = scmp.eq.s32.totalorder %s28, 0
      %p196 = por %p194, %p195
      %p197 = scmp.ne.s32.totalorder %s185, %s186
      %p198 = scmp.eq.s32.totalorder %s29, 1
      %p199 = por %p197, %p198
      %p201 = scmp.ne.s32.totalorder %s186, %s200
      %p202 = scmp.eq.s32.totalorder %s29, 0
      %p203 = por %p201, %p202
      %s205 = sadd.s32 %s204, 1
      %p208 = scmp.eq.s32.totalorder %s23, 1
      %p209 = scmp.ne.s32.totalorder %s204, %s206
      %p210 = scmp.eq.s32.totalorder %s23, 0
      %p211 = por %p209, %p210
      %p212 = scmp.ne.s32.totalorder %s204, %s206
      %p213 = scmp.eq.s32.totalorder %s28, 1
      %p214 = por %p212, %p213
      %p215 = scmp.ne.s32.totalorder %s206, %s207
      %p216 = scmp.eq.s32.totalorder %s28, 0
      %p217 = por %p215, %p216
      %p218 = scmp.ne.s32.totalorder %s206, %s207
      %p219 = scmp.eq.s32.totalorder %s29, 1
      %p220 = por %p218, %p219
      %p222 = scmp.ne.s32.totalorder %s207, %s221
      %p223 = scmp.eq.s32.totalorder %s29, 0
      %p224 = por %p222, %p223
      %s225 = ssub.s32 %s23, %s30
      %p226 = scmp.eq.s32.totalorder %s225, 0
      %s228 = sadd.s32 %s227, 1
      %s229 = scalar_select %p226, %s227, %s228
      %p232 = pneg %p226
      %p233 = scmp.eq.s32.totalorder %s23, 1
      %p234 = por %p232, %p233
      %p235 = scmp.ne.s32.totalorder %s227, %s230
      %p236 = scmp.eq.s32.totalorder %s23, 0
      %p237 = por %p235, %p236
      %p238 = scmp.ne.s32.totalorder %s227, %s230
      %p239 = scmp.eq.s32.totalorder %s28, 1
      %p240 = por %p238, %p239
      %p241 = scmp.ne.s32.totalorder %s230, %s231
      %p242 = scmp.eq.s32.totalorder %s28, 0
      %p243 = por %p241, %p242
      %p244 = scmp.ne.s32.totalorder %s230, %s231
      %p245 = scmp.eq.s32.totalorder %s29, 1
      %p246 = por %p244, %p245
      %p248 = scmp.ne.s32.totalorder %s231, %s247
      %p249 = scmp.eq.s32.totalorder %s29, 0
      %p250 = por %p248, %p249
      %p251 = scmp.le.s32.totalorder 1, %s23
      %p252 = scmp.lt.s32.totalorder %s23, 3
      %p253 = pnand %p251, %p252
      %p254 = pneg %p253
      // Predicated region
      $region9: #{tpu_custom_call.1} parent=5 // pred_check
        _
      $region10: #{tpu_custom_call.1} parent=5 // pred_check_branch
        %256 = sbr.rel (%p253) target = $region12
      $region11: #{tpu_custom_call.1} parent=5 // pred_region
        %s257 = ssub.s32 %s23, 1
        // Predicated region
        $region13: #{tpu_custom_call.1} parent=11 // pred_check
          %p258 = pneg %p70
        $region14: #{tpu_custom_call.1} parent=11 // pred_check_branch
          %260 = sbr.rel (%p258) target = $region16
        $region15: #{tpu_custom_call.1} parent=11 // pred_region
          %s262 = ssub.s32 256, 256
          %263 = vsyncadd [#allocation6], %s262
          %s264 = sshll.u32 [#allocation5], 4
          %s265 = int_to_ptr.vmem [resolvable:$true] %s264
          %270 = dma.hbm_to_vmem [thread:$0]  %s1, 256, %s265, [#allocation6], 64, 64, 4
        $region16: #{tpu_custom_call.1} parent=11 // pred_fallthru
          _
        // Predicated region
        $region17: #{tpu_custom_call.1} parent=11 // pred_check
          %p271 = pneg %p91
        $region18: #{tpu_custom_call.1} parent=11 // pred_check_branch
          %273 = sbr.rel (%p271) target = $region20
        $region19: #{tpu_custom_call.1} parent=11 // pred_region
          _
        $region20: #{tpu_custom_call.1} parent=11 // pred_fallthru
          _
        // Predicated region
        $region21: #{tpu_custom_call.1} parent=11 // pred_check
          %p274 = pneg %p112
        $region22: #{tpu_custom_call.1} parent=11 // pred_check_branch
          %276 = sbr.rel (%p274) target = $region24
        $region23: #{tpu_custom_call.1} parent=11 // pred_region
          %s278 = ssub.s32 1024, 1024
          %279 = vsyncadd [#allocation6], %s278
          %s280 = sshll.u32 [#allocation7], 4
          %s281 = int_to_ptr.vmem [resolvable:$true] %s280
          %286 = dma.hbm_to_vmem [thread:$0]  %s3, 1024, %s281, [#allocation6], 64, 64, 4
        $region24: #{tpu_custom_call.1} parent=11 // pred_fallthru
          _
        // Predicated region
        $region25: #{tpu_custom_call.1} parent=11 // pred_check
          %p287 = pneg %p133
        $region26: #{tpu_custom_call.1} parent=11 // pred_check_branch
          %289 = sbr.rel (%p287) target = $region28
        $region27: #{tpu_custom_call.1} parent=11 // pred_region
          _
        $region28: #{tpu_custom_call.1} parent=11 // pred_fallthru
          _
        // Predicated region
        $region29: #{tpu_custom_call.1} parent=11 // pred_check
          %p290 = pneg %p154
        $region30: #{tpu_custom_call.1} parent=11 // pred_check_branch
          %292 = sbr.rel (%p290) target = $region32
        $region31: #{tpu_custom_call.1} parent=11 // pred_region
          %s294 = ssub.s32 2048, 2048
          %295 = vsyncadd [#allocation9], %s294
          %s296 = sshll.u32 [#allocation8], 4
          %s297 = int_to_ptr.vmem [resolvable:$true] %s296
          %302 = dma.hbm_to_vmem [thread:$0]  %s5, 2048, %s297, [#allocation9], 128, 128, 8
        $region32: #{tpu_custom_call.1} parent=11 // pred_fallthru
          _
        // Predicated region
        $region33: #{tpu_custom_call.1} parent=11 // pred_check
          %p303 = pneg %p175
        $region34: #{tpu_custom_call.1} parent=11 // pred_check_branch
          %305 = sbr.rel (%p303) target = $region36
        $region35: #{tpu_custom_call.1} parent=11 // pred_region
          _
        $region36: #{tpu_custom_call.1} parent=11 // pred_fallthru
          _
        // Predicated region
        $region37: #{tpu_custom_call.1} parent=11 // pred_check
          %p306 = pneg %p196
        $region38: #{tpu_custom_call.1} parent=11 // pred_check_branch
          %308 = sbr.rel (%p306) target = $region40
        $region39: #{tpu_custom_call.1} parent=11 // pred_region
          %s310 = ssub.s32 2048, 2048
          %311 = vsyncadd [#allocation9], %s310
          %s312 = sshll.u32 [#allocation10], 4
          %s313 = int_to_ptr.vmem [resolvable:$true] %s312
          %318 = dma.hbm_to_vmem [thread:$0]  %s7, 2048, %s313, [#allocation9], 64, 64, 4
        $region40: #{tpu_custom_call.1} parent=11 // pred_fallthru
          _
        // Predicated region
        $region41: #{tpu_custom_call.1} parent=11 // pred_check
          %p319 = pneg %p217
        $region42: #{tpu_custom_call.1} parent=11 // pred_check_branch
          %321 = sbr.rel (%p319) target = $region44
        $region43: #{tpu_custom_call.1} parent=11 // pred_region
          _
        $region44: #{tpu_custom_call.1} parent=11 // pred_fallthru
          _
      $region12: #{tpu_custom_call.1} parent=5 // pred_fallthru
        _
      %p322 = scmp.lt.s32.totalorder %s23, 2
      // Predicated region
      $region45: #{tpu_custom_call.1} parent=5 // pred_check
        %p323 = pneg %p322
      $region46: #{tpu_custom_call.1} parent=5 // pred_check_branch
        %325 = sbr.rel (%p323) target = $region48
      $region47: #{tpu_custom_call.1} parent=5 // pred_region
        // Predicated region
        $region49: #{tpu_custom_call.1} parent=47 // pred_check
          %p326 = pneg %p43
        $region50: #{tpu_custom_call.1} parent=47 // pred_check_branch
          %328 = sbr.rel (%p326) target = $region52
        $region51: #{tpu_custom_call.1} parent=47 // pred_region
          %s329 = sand.u32 %s33, 1
          %s330 = scalar_lea.sflag [#allocation3], %s329
          %s331 = sand.u32 %s33, 1
          %s332 = smul.addr %s331, 8
          %s333 = scalar_lea.vmem [#allocation2], %s332
          %s335 = ssub.s32 128, 128
          %336 = vsyncadd %s330, %s335
          %s337 = smul.addr %s23, 128
          %s338 = scalar_lea.hbm %s0, %s337
          %s340 = sshll.u32 %s333, 4
          %s341 = int_to_ptr.vmem [resolvable:$true] %s340
          %343 = dma.hbm_to_vmem [thread:$0]  %s338, 128, %s341, %s330
        $region52: #{tpu_custom_call.1} parent=47 // pred_fallthru
          _
      $region48: #{tpu_custom_call.1} parent=5 // pred_fallthru
        _
      %p344 = scmp.le.s32.totalorder 1, %s23
      %p345 = scmp.lt.s32.totalorder %s23, 3
      %p346 = pnand %p344, %p345
      %p347 = pneg %p346
      // Predicated region
      $region53: #{tpu_custom_call.1} parent=5 // pred_check
        _
      $region54: #{tpu_custom_call.1} parent=5 // pred_check_branch
        %349 = sbr.rel (%p346) target = $region56
      $region55: #{tpu_custom_call.1} parent=5 // pred_region
        %s350 = ssub.s32 %s23, 1
        %s351 = sand.u32 %s36, 1
        %s352 = scalar_lea.sflag [#allocation3], %s351
        %s353 = sand.u32 %s36, 1
        %s354 = smul.addr %s353, 8
        %s355 = scalar_lea.vmem [#allocation2], %s354
        // Predicated region
        $region57: #{tpu_custom_call.1} parent=55 // pred_check
          %p356 = pneg %p49
        $region58: #{tpu_custom_call.1} parent=55 // pred_check_branch
          %358 = sbr.rel (%p356) target = $region60
        $region59: #{tpu_custom_call.1} parent=55 // pred_region
          %359 = dma.done %s352, 128
        $region60: #{tpu_custom_call.1} parent=55 // pred_fallthru
          _
        // Predicated region
        $region61: #{tpu_custom_call.1} parent=55 // pred_check
          %p360 = pneg %p70
        $region62: #{tpu_custom_call.1} parent=55 // pred_check_branch
          %362 = sbr.rel (%p360) target = $region64
        $region63: #{tpu_custom_call.1} parent=55 // pred_region
          %363 = dma.done [#allocation6], 256
        $region64: #{tpu_custom_call.1} parent=55 // pred_fallthru
          _
        // Predicated region
        $region65: #{tpu_custom_call.1} parent=55 // pred_check
          %p364 = pneg %p112
        $region66: #{tpu_custom_call.1} parent=55 // pred_check_branch
          %366 = sbr.rel (%p364) target = $region68
        $region67: #{tpu_custom_call.1} parent=55 // pred_region
          %367 = dma.done [#allocation6], 1024
        $region68: #{tpu_custom_call.1} parent=55 // pred_fallthru
          _
        // Predicated region
        $region69: #{tpu_custom_call.1} parent=55 // pred_check
          %p368 = pneg %p154
        $region70: #{tpu_custom_call.1} parent=55 // pred_check_branch
          %370 = sbr.rel (%p368) target = $region72
        $region71: #{tpu_custom_call.1} parent=55 // pred_region
          %371 = dma.done [#allocation9], 2048
        $region72: #{tpu_custom_call.1} parent=55 // pred_fallthru
          _
        // Predicated region
        $region73: #{tpu_custom_call.1} parent=55 // pred_check
          %p372 = pneg %p196
        $region74: #{tpu_custom_call.1} parent=55 // pred_check_branch
          %374 = sbr.rel (%p372) target = $region76
        $region75: #{tpu_custom_call.1} parent=55 // pred_region
          %375 = dma.done [#allocation9], 2048
        $region76: #{tpu_custom_call.1} parent=55 // pred_fallthru
          _
        %s376 = sand.u32 %s36, 1
        %s377 = scalar_lea.sflag [#allocation3], %s376
        %s378 = sand.u32 %s36, 1
        %s379 = smul.addr %s378, 8
        %s380 = scalar_lea.vmem [#allocation2], %s379
        %p381 = pneg %p49
        %p382 = pneg %p46
        %p383 = pneg %p70
        %p384 = pneg %p67
        %p385 = pneg %p91
        %p386 = pneg %p88
        %p387 = pneg %p112
        %p388 = pneg %p109
        %p389 = pneg %p133
        %p390 = pneg %p130
        %p391 = pneg %p154
        %p392 = pneg %p151
        %p393 = pneg %p175
        %p394 = pneg %p172
        %p395 = pneg %p196
        %p396 = pneg %p193
        %p397 = pneg %p217
        %p398 = pneg %p214
        %p399 = pneg %p243
        %p400 = pneg %p240
        %s401 = sand.u32 %s230, 1
        %s402 = scalar_lea.sflag [#allocation4], %s401
        %s403 = sand.u32 %s230, 1
        %s404 = smul.addr %s403, 8
        %s405 = scalar_lea.vmem [#allocation11], %s404
        %v407 = vld [vmem:[%s355] sm:$0xff]
        %v408 = vpack.c.bf16 %v407, %v407
        %v409 = vld [vmem:[#allocation5] sm:$0xf]
        %v410 = vld [vmem:[#allocation5 + $0x4] sm:$0xf]
        %v411 = vld [vmem:[#allocation5 + $0x8] sm:$0xf]
        %v412 = vld [vmem:[#allocation5 + $0xc] sm:$0xf]
        %v413 = vld [vmem:[%s2] sm:$0x1]
        %v415 = vlaneseq
        %v416 = vshrl.u32 %v415, 7
        %v417 = vsub.s32 0, %v416
        %v418 = vrot.slane %v413, %v417
        %v424 = vunpack.c.l.b16 %v409
        %v425 = vunpack.c.l.b16 %v410
        %v426 = vunpack.c.l.b16 %v411
        %v427 = vunpack.c.l.b16 %v412
        %v428 = vpack.c.b16 %v425, %v424
        %v429 = vpack.c.b16 %v427, %v426
        %vm432 = vcmask 261120
        %v434 = vsel %vm432, %v408, 0
        %436 = vmatprep.subr.bf16.mxu0 0
        %437 = vmatpush1.bf16.msra.mxu0 %v428
        %438 = vmatprep.subr.bf16.mxu0 0
        %439 = vmatpush1.bf16.msra.mxu0 %v429
        %440 = vmatprep.subr.bf16.mxu0 0
        %441 = vmatpush1.bf16.msra.mxu0 0
        %442 = vmatprep.subr.bf16.mxu0 0
        %443 = vmatpush1.bf16.msra.mxu0 0
        %444 = vmatprep.subr.bf16.mxu0 0
        %445 = vmatpush1.bf16.msra.mxu0 0
        %446 = vmatprep.subr.bf16.mxu0 0
        %447 = vmatpush1.bf16.msra.mxu0 0
        %448 = vmatprep.subr.bf16.mxu0 0
        %449 = vmatpush1.bf16.msra.mxu0 0
        %450 = vmatprep.subr.bf16.mxu0 0
        %451 = vmatpush1.bf16.msra.mxu0 0
        %452 = vmatprep.subr.bf16.mxu0 0
        %453 = vmatpush1.bf16.msra.mxu0 0
        %454 = vmatprep.subr.bf16.mxu0 0
        %455 = vmatpush1.bf16.msra.mxu0 0
        %456 = vmatprep.subr.bf16.mxu0 0
        %457 = vmatpush1.bf16.msra.mxu0 0
        %458 = vmatprep.subr.bf16.mxu0 0
        %459 = vmatpush1.bf16.msra.mxu0 0
        %460 = vmatprep.subr.bf16.mxu0 0
        %461 = vmatpush1.bf16.msra.mxu0 0
        %462 = vmatprep.subr.bf16.mxu0 0
        %463 = vmatpush1.bf16.msra.mxu0 0
        %464 = vmatprep.subr.bf16.mxu0 0
        %465 = vmatpush1.bf16.msra.mxu0 0
        %466 = vmatprep.subr.bf16.mxu0 0
        %467 = vmatpush1.bf16.msra.mxu0 0
        %468 = vmatprep.mubr.bf16.mxu0 0
        %469 = vmatmul.mubr.bf16.gmra.mrb[0].mxu0 %v434
        %v470 = vpop.f32.mrb[0].mxu0
        %v471 = vadd.f32 %v418, %v470
        %v472 = vpop.f32.mrb[0].mxu0
        %v473 = vpop.f32.mrb[0].mxu0
        %v474 = vpop.f32.mrb[0].mxu0
        %475 = vdwg.mxu0
        %v476 = vmax.f32 %v471, 0.0
        %v477 = vpack.c.bf16 %v476, %v476
        %v478 = vld [vmem:[#allocation7] sm:$0xf]
        %v479 = vld [vmem:[#allocation7 + $0x4] sm:$0xf]
        %v480 = vld [vmem:[#allocation7 + $0x8] sm:$0xf]
        %v481 = vld [vmem:[#allocation7 + $0xc] sm:$0xf]
        %v482 = vld [vmem:[#allocation7 + $0x10] sm:$0xf]
        %v483 = vld [vmem:[#allocation7 + $0x14] sm:$0xf]
        %v484 = vld [vmem:[#allocation7 + $0x18] sm:$0xf]
        %v485 = vld [vmem:[#allocation7 + $0x1c] sm:$0xf]
        %v486 = vld [vmem:[#allocation7 + $0x20] sm:$0xf]
        %v487 = vld [vmem:[#allocation7 + $0x24] sm:$0xf]
        %v488 = vld [vmem:[#allocation7 + $0x28] sm:$0xf]
        %v489 = vld [vmem:[#allocation7 + $0x2c] sm:$0xf]
        %v490 = vld [vmem:[#allocation7 + $0x30] sm:$0xf]
        %v491 = vld [vmem:[#allocation7 + $0x34] sm:$0xf]
        %v492 = vld [vmem:[#allocation7 + $0x38] sm:$0xf]
        %v493 = vld [vmem:[#allocation7 + $0x3c] sm:$0xf]
        %v494 = vld [vmem:[%s4] sm:$0x1]
        %v496 = vlaneseq
        %v497 = vshrl.u32 %v496, 7
        %v498 = vsub.s32 0, %v497
        %v499 = vrot.slane %v494, %v498
        %v517 = vunpack.c.l.b16 %v478
        %v518 = vunpack.c.l.b16 %v479
        %v519 = vunpack.c.l.b16 %v480
        %v520 = vunpack.c.l.b16 %v481
        %v521 = vunpack.c.l.b16 %v482
        %v522 = vunpack.c.l.b16 %v483
        %v523 = vunpack.c.l.b16 %v484
        %v524 = vunpack.c.l.b16 %v485
        %v525 = vunpack.c.l.b16 %v486
        %v526 = vunpack.c.l.b16 %v487
        %v527 = vunpack.c.l.b16 %v488
        %v528 = vunpack.c.l.b16 %v489
        %v529 = vunpack.c.l.b16 %v490
        %v530 = vunpack.c.l.b16 %v491
        %v531 = vunpack.c.l.b16 %v492
        %v532 = vunpack.c.l.b16 %v493
        %v533 = vpack.c.b16 %v518, %v517
        %v534 = vpack.c.b16 %v520, %v519
        %v535 = vpack.c.b16 %v522, %v521
        %v536 = vpack.c.b16 %v524, %v523
        %v537 = vpack.c.b16 %v526, %v525
        %v538 = vpack.c.b16 %v528, %v527
        %v539 = vpack.c.b16 %v530, %v529
        %v540 = vpack.c.b16 %v532, %v531
        %549 = vmatprep.subr.bf16.mxu0 0
        %550 = vmatpush1.bf16.msra.mxu0 %v533
        %551 = vmatprep.subr.bf16.mxu0 0
        %552 = vmatpush1.bf16.msra.mxu0 %v534
        %553 = vmatprep.subr.bf16.mxu0 0
        %554 = vmatpush1.bf16.msra.mxu0 %v535
        %555 = vmatprep.subr.bf16.mxu0 0
        %556 = vmatpush1.bf16.msra.mxu0 %v536
        %557 = vmatprep.subr.bf16.mxu0 0
        %558 = vmatpush1.bf16.msra.mxu0 %v537
        %559 = vmatprep.subr.bf16.mxu0 0
        %560 = vmatpush1.bf16.msra.mxu0 %v538
        %561 = vmatprep.subr.bf16.mxu0 0
        %562 = vmatpush1.bf16.msra.mxu0 %v539
        %563 = vmatprep.subr.bf16.mxu0 0
        %564 = vmatpush1.bf16.msra.mxu0 %v540
        %565 = vmatprep.subr.bf16.mxu0 0
        %566 = vmatpush1.bf16.msra.mxu0 0
        %567 = vmatprep.subr.bf16.mxu0 0
        %568 = vmatpush1.bf16.msra.mxu0 0
        %569 = vmatprep.subr.bf16.mxu0 0
        %570 = vmatpush1.bf16.msra.mxu0 0
        %571 = vmatprep.subr.bf16.mxu0 0
        %572 = vmatpush1.bf16.msra.mxu0 0
        %573 = vmatprep.subr.bf16.mxu0 0
        %574 = vmatpush1.bf16.msra.mxu0 0
        %575 = vmatprep.subr.bf16.mxu0 0
        %576 = vmatpush1.bf16.msra.mxu0 0
        %577 = vmatprep.subr.bf16.mxu0 0
        %578 = vmatpush1.bf16.msra.mxu0 0
        %579 = vmatprep.subr.bf16.mxu0 0
        %580 = vmatpush1.bf16.msra.mxu0 0
        %581 = vmatprep.mubr.bf16.mxu0 0
        %582 = vmatmul.mubr.bf16.gmra.mrb[0].mxu0 %v477
        %v583 = vpop.f32.mrb[0].mxu0
        %v584 = vadd.f32 %v499, %v583
        %v585 = vpop.f32.mrb[0].mxu0
        %v586 = vpop.f32.mrb[0].mxu0
        %v587 = vpop.f32.mrb[0].mxu0
        %588 = vdwg.mxu0
        %v589 = vmax.f32 %v584, 0.0
        %v590 = vpack.c.bf16 %v589, %v589
        %v591 = vld [vmem:[#allocation8] sm:$0xff]
        %v592 = vld [vmem:[#allocation8 + $0x8] sm:$0xff]
        %v593 = vld [vmem:[#allocation8 + $0x10] sm:$0xff]
        %v594 = vld [vmem:[#allocation8 + $0x18] sm:$0xff]
        %v595 = vld [vmem:[#allocation8 + $0x20] sm:$0xff]
        %v596 = vld [vmem:[#allocation8 + $0x28] sm:$0xff]
        %v597 = vld [vmem:[#allocation8 + $0x30] sm:$0xff]
        %v598 = vld [vmem:[#allocation8 + $0x38] sm:$0xff]
        %v599 = vld [vmem:[#allocation8 + $0x40] sm:$0xff]
        %v600 = vld [vmem:[#allocation8 + $0x48] sm:$0xff]
        %v601 = vld [vmem:[#allocation8 + $0x50] sm:$0xff]
        %v602 = vld [vmem:[#allocation8 + $0x58] sm:$0xff]
        %v603 = vld [vmem:[#allocation8 + $0x60] sm:$0xff]
        %v604 = vld [vmem:[#allocation8 + $0x68] sm:$0xff]
        %v605 = vld [vmem:[#allocation8 + $0x70] sm:$0xff]
        %v606 = vld [vmem:[#allocation8 + $0x78] sm:$0xff]
        %v607 = vld [vmem:[%s6] sm:$0x3]
        %v609 = vlaneseq
        %v610 = vshrl.u32 %v609, 7
        %v611 = vsub.s32 0, %v610
        %v612 = vrot.slane %v607, %v611
        %v613 = vlaneseq
        %v614 = vshrl.u32 %v613, 7
        %v615 = vsub.s32 1, %v614
        %v616 = vrot.slane %v607, %v615
        %v635 = vunpack.c.l.b16 %v591
        %v636 = vunpack.c.h.b16 %v591
        %v637 = vunpack.c.l.b16 %v592
        %v638 = vunpack.c.h.b16 %v592
        %v639 = vunpack.c.l.b16 %v593
        %v640 = vunpack.c.h.b16 %v593
        %v641 = vunpack.c.l.b16 %v594
        %v642 = vunpack.c.h.b16 %v594
        %v643 = vunpack.c.l.b16 %v595
        %v644 = vunpack.c.h.b16 %v595
        %v645 = vunpack.c.l.b16 %v596
        %v646 = vunpack.c.h.b16 %v596
        %v647 = vunpack.c.l.b16 %v597
        %v648 = vunpack.c.h.b16 %v597
        %v649 = vunpack.c.l.b16 %v598
        %v650 = vunpack.c.h.b16 %v598
        %v651 = vunpack.c.l.b16 %v599
        %v652 = vunpack.c.h.b16 %v599
        %v653 = vunpack.c.l.b16 %v600
        %v654 = vunpack.c.h.b16 %v600
        %v655 = vunpack.c.l.b16 %v601
        %v656 = vunpack.c.h.b16 %v601
        %v657 = vunpack.c.l.b16 %v602
        %v658 = vunpack.c.h.b16 %v602
        %v659 = vunpack.c.l.b16 %v603
        %v660 = vunpack.c.h.b16 %v603
        %v661 = vunpack.c.l.b16 %v604
        %v662 = vunpack.c.h.b16 %v604
        %v663 = vunpack.c.l.b16 %v605
        %v664 = vunpack.c.h.b16 %v605
        %v665 = vunpack.c.l.b16 %v606
        %v666 = vunpack.c.h.b16 %v606
        %v667 = vpack.c.b16 %v637, %v635
        %v668 = vpack.c.b16 %v638, %v636
        %v669 = vpack.c.b16 %v641, %v639
        %v670 = vpack.c.b16 %v642, %v640
        %v671 = vpack.c.b16 %v645, %v643
        %v672 = vpack.c.b16 %v646, %v644
        %v673 = vpack.c.b16 %v649, %v647
        %v674 = vpack.c.b16 %v650, %v648
        %v675 = vpack.c.b16 %v653, %v651
        %v676 = vpack.c.b16 %v654, %v652
        %v677 = vpack.c.b16 %v657, %v655
        %v678 = vpack.c.b16 %v658, %v656
        %v679 = vpack.c.b16 %v661, %v659
        %v680 = vpack.c.b16 %v662, %v660
        %v681 = vpack.c.b16 %v665, %v663
        %v682 = vpack.c.b16 %v666, %v664
        %699 = vmatprep.subr.bf16.mxu0 %v668
        %700 = vmatpush1.bf16.msra.mxu0 %v667
        %701 = vmatprep.subr.bf16.mxu0 %v670
        %702 = vmatpush1.bf16.msra.mxu0 %v669
        %703 = vmatprep.subr.bf16.mxu0 %v672
        %704 = vmatpush1.bf16.msra.mxu0 %v671
        %705 = vmatprep.subr.bf16.mxu0 %v674
        %706 = vmatpush1.bf16.msra.mxu0 %v673
        %707 = vmatprep.subr.bf16.mxu0 %v676
        %708 = vmatpush1.bf16.msra.mxu0 %v675
        %709 = vmatprep.subr.bf16.mxu0 %v678
        %710 = vmatpush1.bf16.msra.mxu0 %v677
        %711 = vmatprep.subr.bf16.mxu0 %v680
        %712 = vmatpush1.bf16.msra.mxu0 %v679
        %713 = vmatprep.subr.bf16.mxu0 %v682
        %714 = vmatpush1.bf16.msra.mxu0 %v681
        %715 = vmatprep.subr.bf16.mxu0 0
        %716 = vmatpush1.bf16.msra.mxu0 0
        %717 = vmatprep.subr.bf16.mxu0 0
        %718 = vmatpush1.bf16.msra.mxu0 0
        %719 = vmatprep.subr.bf16.mxu0 0
        %720 = vmatpush1.bf16.msra.mxu0 0
        %721 = vmatprep.subr.bf16.mxu0 0
        %722 = vmatpush1.bf16.msra.mxu0 0
        %723 = vmatprep.subr.bf16.mxu0 0
        %724 = vmatpush1.bf16.msra.mxu0 0
        %725 = vmatprep.subr.bf16.mxu0 0
        %726 = vmatpush1.bf16.msra.mxu0 0
        %727 = vmatprep.subr.bf16.mxu0 0
        %728 = vmatpush1.bf16.msra.mxu0 0
        %729 = vmatprep.subr.bf16.mxu0 0
        %730 = vmatpush1.bf16.msra.mxu0 0
        %731 = vmatprep.mubr.bf16.mxu0 0
        %732 = vmatmul.mubr.bf16.gmra.mrb[0].mxu0 %v590
        %v733 = vpop.f32.mrb[0].mxu0
        %v734 = vadd.f32 %v612, %v733
        %v735 = vpop.f32.mrb[0].mxu0
        %v736 = vadd.f32 %v616, %v735
        %v737 = vpop.f32.mrb[0].mxu0
        %v738 = vpop.f32.mrb[0].mxu0
        %739 = vdwg.mxu0
        %v740 = vmax.f32 %v734, 0.0
        %v741 = vmax.f32 %v736, 0.0
        %v742 = vpack.c.bf16 %v740, %v740
        %v743 = vpack.c.bf16 %v741, %v741
        %v744 = vld [vmem:[#allocation10] sm:$0xf]
        %v745 = vld [vmem:[#allocation10 + $0x4] sm:$0xf]
        %v746 = vld [vmem:[#allocation10 + $0x8] sm:$0xf]
        %v747 = vld [vmem:[#allocation10 + $0xc] sm:$0xf]
        %v748 = vld [vmem:[#allocation10 + $0x10] sm:$0xf]
        %v749 = vld [vmem:[#allocation10 + $0x14] sm:$0xf]
        %v750 = vld [vmem:[#allocation10 + $0x18] sm:$0xf]
        %v751 = vld [vmem:[#allocation10 + $0x1c] sm:$0xf]
        %v752 = vld [vmem:[#allocation10 + $0x20] sm:$0xf]
        %v753 = vld [vmem:[#allocation10 + $0x24] sm:$0xf]
        %v754 = vld [vmem:[#allocation10 + $0x28] sm:$0xf]
        %v755 = vld [vmem:[#allocation10 + $0x2c] sm:$0xf]
        %v756 = vld [vmem:[#allocation10 + $0x30] sm:$0xf]
        %v757 = vld [vmem:[#allocation10 + $0x34] sm:$0xf]
        %v758 = vld [vmem:[#allocation10 + $0x38] sm:$0xf]
        %v759 = vld [vmem:[#allocation10 + $0x3c] sm:$0xf]
        %v760 = vld [vmem:[#allocation10 + $0x40] sm:$0xf]
        %v761 = vld [vmem:[#allocation10 + $0x44] sm:$0xf]
        %v762 = vld [vmem:[#allocation10 + $0x48] sm:$0xf]
        %v763 = vld [vmem:[#allocation10 + $0x4c] sm:$0xf]
        %v764 = vld [vmem:[#allocation10 + $0x50] sm:$0xf]
        %v765 = vld [vmem:[#allocation10 + $0x54] sm:$0xf]
        %v766 = vld [vmem:[#allocation10 + $0x58] sm:$0xf]
        %v767 = vld [vmem:[#allocation10 + $0x5c] sm:$0xf]
        %v768 = vld [vmem:[#allocation10 + $0x60] sm:$0xf]
        %v769 = vld [vmem:[#allocation10 + $0x64] sm:$0xf]
        %v770 = vld [vmem:[#allocation10 + $0x68] sm:$0xf]
        %v771 = vld [vmem:[#allocation10 + $0x6c] sm:$0xf]
        %v772 = vld [vmem:[#allocation10 + $0x70] sm:$0xf]
        %v773 = vld [vmem:[#allocation10 + $0x74] sm:$0xf]
        %v774 = vld [vmem:[#allocation10 + $0x78] sm:$0xf]
        %v775 = vld [vmem:[#allocation10 + $0x7c] sm:$0xf]
        %v776 = vld [vmem:[%s8] sm:$0x1]
        %v778 = vlaneseq
        %v779 = vshrl.u32 %v778, 7
        %v780 = vsub.s32 0, %v779
        %v781 = vrot.slane %v776, %v780
        %v815 = vunpack.c.l.b16 %v744
        %v816 = vunpack.c.l.b16 %v745
        %v817 = vunpack.c.l.b16 %v746
        %v818 = vunpack.c.l.b16 %v747
        %v819 = vunpack.c.l.b16 %v748
        %v820 = vunpack.c.l.b16 %v749
        %v821 = vunpack.c.l.b16 %v750
        %v822 = vunpack.c.l.b16 %v751
        %v823 = vunpack.c.l.b16 %v752
        %v824 = vunpack.c.l.b16 %v753
        %v825 = vunpack.c.l.b16 %v754
        %v826 = vunpack.c.l.b16 %v755
        %v827 = vunpack.c.l.b16 %v756
        %v828 = vunpack.c.l.b16 %v757
        %v829 = vunpack.c.l.b16 %v758
        %v830 = vunpack.c.l.b16 %v759
        %v831 = vunpack.c.l.b16 %v760
        %v832 = vunpack.c.l.b16 %v761
        %v833 = vunpack.c.l.b16 %v762
        %v834 = vunpack.c.l.b16 %v763
        %v835 = vunpack.c.l.b16 %v764
        %v836 = vunpack.c.l.b16 %v765
        %v837 = vunpack.c.l.b16 %v766
        %v838 = vunpack.c.l.b16 %v767
        %v839 = vunpack.c.l.b16 %v768
        %v840 = vunpack.c.l.b16 %v769
        %v841 = vunpack.c.l.b16 %v770
        %v842 = vunpack.c.l.b16 %v771
        %v843 = vunpack.c.l.b16 %v772
        %v844 = vunpack.c.l.b16 %v773
        %v845 = vunpack.c.l.b16 %v774
        %v846 = vunpack.c.l.b16 %v775
        %v847 = vpack.c.b16 %v816, %v815
        %v848 = vpack.c.b16 %v818, %v817
        %v849 = vpack.c.b16 %v820, %v819
        %v850 = vpack.c.b16 %v822, %v821
        %v851 = vpack.c.b16 %v824, %v823
        %v852 = vpack.c.b16 %v826, %v825
        %v853 = vpack.c.b16 %v828, %v827
        %v854 = vpack.c.b16 %v830, %v829
        %v855 = vpack.c.b16 %v832, %v831
        %v856 = vpack.c.b16 %v834, %v833
        %v857 = vpack.c.b16 %v836, %v835
        %v858 = vpack.c.b16 %v838, %v837
        %v859 = vpack.c.b16 %v840, %v839
        %v860 = vpack.c.b16 %v842, %v841
        %v861 = vpack.c.b16 %v844, %v843
        %v862 = vpack.c.b16 %v846, %v845
        %879 = vmatprep.subr.bf16.mxu0 0
        %880 = vmatpush1.bf16.msra.mxu0 %v847
        %881 = vmatprep.subr.bf16.mxu0 0
        %882 = vmatpush1.bf16.msra.mxu0 %v848
        %883 = vmatprep.subr.bf16.mxu0 0
        %884 = vmatpush1.bf16.msra.mxu0 %v849
        %885 = vmatprep.subr.bf16.mxu0 0
        %886 = vmatpush1.bf16.msra.mxu0 %v850
        %887 = vmatprep.subr.bf16.mxu0 0
        %888 = vmatpush1.bf16.msra.mxu0 %v851
        %889 = vmatprep.subr.bf16.mxu0 0
        %890 = vmatpush1.bf16.msra.mxu0 %v852
        %891 = vmatprep.subr.bf16.mxu0 0
        %892 = vmatpush1.bf16.msra.mxu0 %v853
        %893 = vmatprep.subr.bf16.mxu0 0
        %894 = vmatpush1.bf16.msra.mxu0 %v854
        %895 = vmatprep.subr.bf16.mxu0 0
        %896 = vmatpush1.bf16.msra.mxu0 %v855
        %897 = vmatprep.subr.bf16.mxu0 0
        %898 = vmatpush1.bf16.msra.mxu0 %v856
        %899 = vmatprep.subr.bf16.mxu0 0
        %900 = vmatpush1.bf16.msra.mxu0 %v857
        %901 = vmatprep.subr.bf16.mxu0 0
        %902 = vmatpush1.bf16.msra.mxu0 %v858
        %903 = vmatprep.subr.bf16.mxu0 0
        %904 = vmatpush1.bf16.msra.mxu0 %v859
        %905 = vmatprep.subr.bf16.mxu0 0
        %906 = vmatpush1.bf16.msra.mxu0 %v860
        %907 = vmatprep.subr.bf16.mxu0 0
        %908 = vmatpush1.bf16.msra.mxu0 %v861
        %909 = vmatprep.subr.bf16.mxu0 0
        %910 = vmatpush1.bf16.msra.mxu0 %v862
        %911 = vmatprep.mubr.bf16.mxu0 %v743
        %912 = vmatmul.mubr.bf16.gmra.mrb[0].mxu0 %v742
        %v913 = vpop.f32.mrb[0].mxu0
        %v914 = vadd.f32 %v781, %v913
        %v915 = vpop.f32.mrb[0].mxu0
        %v916 = vpop.f32.mrb[0].mxu0
        %v917 = vpop.f32.mrb[0].mxu0
        %918 = vdwg.mxu0
        %919 = vst [vmem:[%s405] sm:$0xff] %v914
        %s920 = sand.u32 %s230, 1
        %s921 = scalar_lea.sflag [#allocation4], %s920
        %s922 = sand.u32 %s230, 1
        %s923 = smul.addr %s922, 8
        %s924 = scalar_lea.vmem [#allocation11], %s923
        // Predicated region
        $region77: #{tpu_custom_call.1} parent=55 // pred_check
          %p925 = pneg %p240
        $region78: #{tpu_custom_call.1} parent=55 // pred_check_branch
          %927 = sbr.rel (%p925) target = $region80
        $region79: #{tpu_custom_call.1} parent=55 // pred_region
          %s929 = ssub.s32 128, 128
          %930 = vsyncadd %s921, %s929
          %s931 = smul.addr %s28, 128
          %s932 = scalar_lea.hbm %s9, %s931
          %s934 = sshll.u32 %s924, 4
          %s935 = int_to_ptr.vmem [resolvable:$true] %s934
          %937 = dma.vmem_to_hbm [thread:$0]  %s935, 128, %s932, %s921
        $region80: #{tpu_custom_call.1} parent=55 // pred_fallthru
          _
      $region56: #{tpu_custom_call.1} parent=5 // pred_fallthru
        _
      %p938 = scmp.le.s32.totalorder 2, %s23
      // Predicated region
      $region81: #{tpu_custom_call.1} parent=5 // pred_check
        %p939 = pneg %p938
      $region82: #{tpu_custom_call.1} parent=5 // pred_check_branch
        %941 = sbr.rel (%p939) target = $region84
      $region83: #{tpu_custom_call.1} parent=5 // pred_region
        %s942 = ssub.s32 %s23, 2
        // Predicated region
        $region85: #{tpu_custom_call.1} parent=83 // pred_check
          %p943 = pneg %p246
        $region86: #{tpu_custom_call.1} parent=83 // pred_check_branch
          %945 = sbr.rel (%p943) target = $region88
        $region87: #{tpu_custom_call.1} parent=83 // pred_region
          %s946 = sand.u32 %s231, 1
          %s947 = scalar_lea.sflag [#allocation4], %s946
          %s948 = sand.u32 %s231, 1
          %s949 = smul.addr %s948, 8
          %s950 = scalar_lea.vmem [#allocation11], %s949
          %951 = dma.done %s947, 128
        $region88: #{tpu_custom_call.1} parent=83 // pred_fallthru
          _
      $region84: #{tpu_custom_call.1} parent=5 // pred_fallthru
        _
    $region6: #{tpu_custom_call.1} parent=1 // loop_footer
      %s27 = sadd.s32 1, %s23
    $region7: #{tpu_custom_call.1} parent=1 // loop_footer_branch
      %22 = sbr.rel target = $region3
    $region8: #{tpu_custom_call.1} parent=1 // loop_exit
      _
    %952 = vsyncpa [#allocation3], 1
    %s953 = scalar_lea.sflag [#allocation3], 1
    %954 = vsyncpa %s953, 1
    %955 = vsyncpa [#allocation6], 1
    %956 = vsyncpa [#allocation9], 1
    %957 = vsyncpa [#allocation4], 1
    %s958 = scalar_lea.sflag [#allocation4], 1
    %959 = vsyncpa %s958, 1

</llo_original>
